<compile_context>
chip_gen: v7x
topology: tpu7x:2x2x1
jax: 0.10.0
libtpu: 0.0.40
codegen_flags: <defaults>
</compile_context>

<pallas_src>
import math
import functools

import jax
import jax.numpy as jnp
import numpy as np
from jax import lax
from jax.experimental import pallas as pl
from jax.experimental.pallas import tpu as pltpu


def encoder_layer_kernel(xq_ref, xf_ref, qkvw_ref, w1_ref, w2_ref,
                         g1_ref, b1_ref, g2_ref, b2_ref, o_ref,
                         kv_ref, attn_ref, *, n_heads, inner_dim, eps):
    D = n_heads * inner_dim
    w_qkv = qkvw_ref[...]                     # (D, 3D) bf16
    scale = 1.0 / math.sqrt(inner_dim)

    # ---- K/V projection for the full sequence: once per batch element ----
    # (query-tile index 0), cached in VMEM and reused by every query tile.
    @pl.when(pl.program_id(1) == 0)
    def _():
        kv_ref[...] = jnp.dot(
            xf_ref[...], w_qkv[:, D:],
            preferred_element_type=jnp.float32).astype(jnp.bfloat16)   # (N, 2D)

    xq_f32 = xq_ref[...]                      # (TQ, D) f32 -- residual path
    xq = xq_f32.astype(jnp.bfloat16)          # bf16 copy for the MXU

    # Q for this query tile; fold the 1/sqrt(dh) scale in once here instead of
    # scaling the (TQ, N) score matrix per head.
    q_all = (jnp.dot(xq, w_qkv[:, :D], preferred_element_type=jnp.float32)
             * scale).astype(jnp.bfloat16)                             # (TQ, D)
    kv = kv_ref[...]
    k_all = kv[:, :D]                                                  # (N, D)
    v_all = kv[:, D:]                                                  # (N, D)

    # ---- per-head scaled-dot-product attention -> (TQ, D) scratch slab ----
    # TODO(synk): when inner_dim < 128 at production sizes, pack 2+ heads per
    #             MXU pass to fill the contraction instead of per-head slices.
    for h in range(n_heads):
        lo = h * inner_dim
        qh = q_all[:, lo:lo + inner_dim]                               # (TQ, dh)
        kh = k_all[:, lo:lo + inner_dim]                               # (N,  dh)
        vh = v_all[:, lo:lo + inner_dim]                               # (N,  dh)
        # q @ k^T as a direct contraction -- no materialized transpose.
        s = lax.dot_general(qh, kh, (((1,), (1,)), ((), ())),
                            preferred_element_type=jnp.float32)        # (TQ, N)
        m = jnp.max(s, axis=-1, keepdims=True)
        e = jnp.exp(s - m)                                             # f32 softmax
        denom = jnp.sum(e, axis=-1, keepdims=True)
        p = (e * pl.reciprocal(denom, approx=True)).astype(jnp.bfloat16)
        attn_ref[:, lo:lo + inner_dim] = jnp.dot(
            p, vh, preferred_element_type=jnp.float32)
    # out_proj skipped: inner_dim * n_heads == dim (same branch as PyTorch).

    # ---- residual + LayerNorm 1 (statistics in f32) ----
    h1 = attn_ref[...] + xq_f32
    mu1 = jnp.mean(h1, axis=-1, keepdims=True)
    var1 = jnp.mean((h1 - mu1) ** 2, axis=-1, keepdims=True)
    y1 = (h1 - mu1) * lax.rsqrt(var1 + eps)
    y1 = y1 * g1_ref[...] + b1_ref[...]

    # ---- MLP: Linear(no bias) -> ReLU -> Linear(no bias), bf16 matmuls ----
    hmid = jnp.dot(y1.astype(jnp.bfloat16), w1_ref[...],
                   preferred_element_type=jnp.float32)                 # (TQ, M)
    hmid = jnp.maximum(hmid, 0.0).astype(jnp.bfloat16)
    mlp_out = jnp.dot(hmid, w2_ref[...],
                      preferred_element_type=jnp.float32)              # (TQ, D)

    # ---- residual + LayerNorm 2 (statistics in f32) ----
    h2 = mlp_out + y1
    mu2 = jnp.mean(h2, axis=-1, keepdims=True)
    var2 = jnp.mean((h2 - mu2) ** 2, axis=-1, keepdims=True)
    y2 = (h2 - mu2) * lax.rsqrt(var2 + eps)
    y2 = y2 * g2_ref[...] + b2_ref[...]

    o_ref[...] = y2.astype(o_ref.dtype)


def transformer_encoder_layer(x, params, *, n_heads, inner_dim, eps=1e-5, tq=None):
    B, N, D = x.shape
    assert n_heads * inner_dim == D, "out_proj-free path requires n_heads*inner_dim == dim"
    M = params["w1_t"].shape[1]

    # Sequence-tile size: multiple of 8 sublanes, dividing N (fallback: whole seq).
    if tq is None:
        tq = N if N <= 128 else 128
    if N % tq != 0:
        tq = N
    nq = N // tq

    # bf16 operands for the MXU; the query tile stays f32 (exact residual);
    # LayerNorm params stay f32.
    x_f32 = x.astype(jnp.float32)
    x_bf16 = x.astype(jnp.bfloat16)
    qkvw = params["qkvw_t"].astype(jnp.bfloat16)
    w1 = params["w1_t"].astype(jnp.bfloat16)
    w2 = params["w2_t"].astype(jnp.bfloat16)
    g1 = params["g1"].astype(jnp.float32)
    b1 = params["b1"].astype(jnp.float32)
    g2 = params["g2"].astype(jnp.float32)
    b2 = params["b2"].astype(jnp.float32)

    kernel = functools.partial(
        encoder_layer_kernel, n_heads=n_heads, inner_dim=inner_dim, eps=eps)

    full = lambda shape: pl.BlockSpec(shape, lambda b, qi: (0,) * len(shape))

    # Explicit VMEM budget (chip-aware cap; default scoped limit is 16-32 MiB).
    est = (
        (D * 3 * D + 2 * D * M) * 2                 # resident bf16 weights
        + 2 * (tq * D) * (4 + 4)                    # double-buffered xq in / out (f32)
        + 2 * (N * D) * 2                           # double-buffered full-seq slab (bf16)
        + (N * 2 * D) * 2 + (tq * D) * 4            # kv + attention scratch
        + (tq * 3 * D + tq * N + tq * M + 2 * tq * D) * 4  # live intermediates
        + 4 * D * 4                                 # LN params
    )
    try:
        vmem_cap = pltpu.get_tpu_info().vmem_capacity_bytes
    except Exception:
        vmem_cap = 64 * 1024 * 1024                 # v7x-safe fallback
    vmem_limit = int(min(max(2 * est, 32 * 1024 * 1024), int(0.75 * vmem_cap)))

    cost = pl.CostEstimate(
        flops=int(2 * B * N * D * D * (1 + 2 / max(nq, 1)) * max(nq, 1)  # Q + cached K/V
                  + 4 * B * N * N * D               # QK^T + PV
                  + 4 * B * N * D * M),             # MLP
        transcendentals=int(B * n_heads * N * N),   # softmax exp
        bytes_accessed=int(B * N * D * 4            # x query tiles (f32)
                           + B * N * D * 2          # x full-seq slab (bf16)
                           + B * N * D * 4          # output (f32)
                           + (3 * D * D + 2 * D * M) * 2),  # weights (bf16)
    )

    return pl.pallas_call(
        kernel,
        out_shape=jax.ShapeDtypeStruct((B, N, D), jnp.float32),
        grid_spec=pltpu.PrefetchScalarGridSpec(
            num_scalar_prefetch=0,
            grid=(B, nq),
            in_specs=[
                pl.BlockSpec((None, tq, D), lambda b, qi: (b, qi, 0)),  # query tile (f32)
                pl.BlockSpec((None, N, D), lambda b, qi: (b, 0, 0)),    # full seq (bf16, K/V)
                full((D, 3 * D)),                                       # qkv weight^T (bf16)
                full((D, M)),                                           # mlp w1^T (bf16)
                full((M, D)),                                           # mlp w2^T (bf16)
                full((1, D)), full((1, D)),                             # LN1 gamma, beta
                full((1, D)), full((1, D)),                             # LN2 gamma, beta
            ],
            out_specs=pl.BlockSpec((None, tq, D), lambda b, qi: (b, qi, 0)),
            scratch_shapes=[
                pltpu.VMEM((N, 2 * D), jnp.bfloat16),   # cached K/V (per batch element)
                pltpu.VMEM((tq, D), jnp.float32),       # attention output slab
            ]),
        compiler_params=pltpu.CompilerParams(
            dimension_semantics=("parallel", "arbitrary"),
            vmem_limit_bytes=vmem_limit),
        cost_estimate=cost,
    )(x_f32, x_bf16, qkvw, w1, w2, g1, b1, g2, b2)


def reference_forward(x, params, *, n_heads, inner_dim, eps=1e-5):
    """Pure-JAX f32 reference mirroring the PyTorch forward."""
    B, N, D = x.shape
    qkv = x @ params["qkvw_t"]
    q, k, v = jnp.split(qkv, 3, axis=-1)

    def split_heads(t):  # 'b n (h d) -> b h n d'
        return t.reshape(B, N, n_heads, inner_dim).transpose(0, 2, 1, 3)

    q, k, v = map(split_heads, (q, k, v))
    s = jnp.einsum("bhnd,bhmd->bhnm", q, k) / math.sqrt(inner_dim)
    p = jax.nn.softmax(s, axis=-1)
    a = jnp.einsum("bhnm,bhmd->bhnd", p, v)
    a = a.transpose(0, 2, 1, 3).reshape(B, N, D)   # 'b h n d -> b n (h d)'

    def ln(t, g, b):
        mu = jnp.mean(t, axis=-1, keepdims=True)
        var = jnp.mean((t - mu) ** 2, axis=-1, keepdims=True)
        return (t - mu) / jnp.sqrt(var + eps) * g + b

    y1 = ln(a + x, params["g1"][0], params["b1"][0])
    mlp = jnp.maximum(y1 @ params["w1_t"], 0.0) @ params["w2_t"]
    return ln(mlp + y1, params["g2"][0], params["b2"][0])


if __name__ == "__main__":
    B, N, D, MLP_DIM = 2, 8, 32, 64
    N_HEADS = 8
    INNER_DIM = D // N_HEADS

    key = jax.random.PRNGKey(0)
    kx, kqkv, kw1, kw2, kg1, kb1, kg2, kb2 = jax.random.split(key, 8)

    x = jax.random.normal(kx, (B, N, D), dtype=jnp.float32)

    # PyTorch Linear stores weight as (out, in); we pass (in, out) = W.T so the
    # kernel computes x @ W.T directly.
    params = {
        "qkvw_t": (jax.random.normal(kqkv, (3 * D, D), jnp.float32) * 0.1).T,
        "w1_t":   (jax.random.normal(kw1, (MLP_DIM, D), jnp.float32) * 0.1).T,
        "w2_t":   (jax.random.normal(kw2, (D, MLP_DIM), jnp.float32) * 0.1).T,
        "g1": 1.0 + 0.1 * jax.random.normal(kg1, (1, D), jnp.float32),
        "b1": 0.1 * jax.random.normal(kb1, (1, D), jnp.float32),
        "g2": 1.0 + 0.1 * jax.random.normal(kg2, (1, D), jnp.float32),
        "b2": 0.1 * jax.random.normal(kb2, (1, D), jnp.float32),
    }

    out = transformer_encoder_layer(x, params, n_heads=N_HEADS, inner_dim=INNER_DIM)
    out = jax.block_until_ready(out)

    ref = reference_forward(x, params, n_heads=N_HEADS, inner_dim=INNER_DIM)
    # bf16 matmul operands (f32 accumulation) vs. pure-f32 reference.
    np.testing.assert_allclose(np.asarray(out), np.asarray(ref), rtol=3e-2, atol=3e-2)

    print("KERNEL_OK")
</pallas_src>

<mosaic_0001>
module attributes {stable_mosaic.version = 11 : i64} {
  func.func @encoder_layer_kernel(%arg0: i32, %arg1: i32, %arg2: memref<1x8x32xf32, #tpu.memory_space<vmem>>, %arg3: memref<1x8x32xbf16, #tpu.memory_space<vmem>>, %arg4: memref<32x96xbf16, #tpu.memory_space<vmem>>, %arg5: memref<32x64xbf16, #tpu.memory_space<vmem>>, %arg6: memref<64x32xbf16, #tpu.memory_space<vmem>>, %arg7: memref<1x32xf32, #tpu.memory_space<vmem>>, %arg8: memref<1x32xf32, #tpu.memory_space<vmem>>, %arg9: memref<1x32xf32, #tpu.memory_space<vmem>>, %arg10: memref<1x32xf32, #tpu.memory_space<vmem>>, %arg11: memref<1x8x32xf32, #tpu.memory_space<vmem>>, %arg12: memref<8x64xbf16, #tpu.memory_space<vmem>>, %arg13: memref<8x32xf32, #tpu.memory_space<vmem>>) attributes {dimension_semantics = [#tpu.dimension_semantics<parallel>, #tpu.dimension_semantics<arbitrary>], iteration_bounds = array<i64: 2, 1>, scalar_prefetch = 0 : i64, scratch_operands = 2 : i64, tpu.core_type = #tpu.core_type<tc>, window_params = [{transform_indices = @transform_0, window_bounds = array<i64: 1, 8, 32>}, {transform_indices = @transform_1, window_bounds = array<i64: 1, 8, 32>}, {pipeline_mode = #tpu.pipeline_mode<synchronous>, transform_indices = @transform_2, window_bounds = array<i64: 32, 96>}, {pipeline_mode = #tpu.pipeline_mode<synchronous>, transform_indices = @transform_3, window_bounds = array<i64: 32, 64>}, {pipeline_mode = #tpu.pipeline_mode<synchronous>, transform_indices = @transform_4, window_bounds = array<i64: 64, 32>}, {pipeline_mode = #tpu.pipeline_mode<synchronous>, transform_indices = @transform_5, window_bounds = array<i64: 1, 32>}, {pipeline_mode = #tpu.pipeline_mode<synchronous>, transform_indices = @transform_6, window_bounds = array<i64: 1, 32>}, {pipeline_mode = #tpu.pipeline_mode<synchronous>, transform_indices = @transform_7, window_bounds = array<i64: 1, 32>}, {pipeline_mode = #tpu.pipeline_mode<synchronous>, transform_indices = @transform_8, window_bounds = array<i64: 1, 32>}, {transform_indices = @transform_9, window_bounds = array<i64: 1, 8, 32>}]} {
    %c0 = arith.constant 0 : index
    %c0_0 = arith.constant 0 : index
    %0 = vector.load %arg4[%c0, %c0_0] : memref<32x96xbf16, #tpu.memory_space<vmem>>, vector<32x96xbf16>
    %c0_i32 = arith.constant 0 : i32
    %1 = arith.cmpi eq, %arg1, %c0_i32 : i32
    %2 = arith.extui %1 : i1 to i32
    %c0_i32_1 = arith.constant 0 : i32
    %3 = arith.cmpi ne, %2, %c0_i32_1 : i32
    scf.if %3 {
      %c0_79 = arith.constant 0 : index
      %c0_80 = arith.constant 0 : index
      %c0_81 = arith.constant 0 : index
      %213 = vector.load %arg3[%c0_79, %c0_80, %c0_81] : memref<1x8x32xbf16, #tpu.memory_space<vmem>>, vector<1x8x32xbf16>
      %214 = vector.shape_cast %213 : vector<1x8x32xbf16> to vector<8x32xbf16>
      %215 = vector.extract_strided_slice %0 {offsets = [0, 32], sizes = [32, 64], strides = [1, 1]} : vector<32x96xbf16> to vector<32x64xbf16>
      %cst_82 = arith.constant dense<0.000000e+00> : vector<8x64xf32>
      %216 = tpu.matmul %214, %215, %cst_82 {dimension_numbers = #tpu.dot_dimension_numbers<[1], [0], [0], [1], [0, 0, 1, 1], [], []>} : vector<8x32xbf16>, vector<32x64xbf16>, vector<8x64xf32> -> vector<8x64xf32>
      %217 = arith.truncf %216 : vector<8x64xf32> to vector<8x64xbf16>
      %c0_83 = arith.constant 0 : index
      %c0_84 = arith.constant 0 : index
      %218 = vector.load %arg12[%c0_83, %c0_84] : memref<8x64xbf16, #tpu.memory_space<vmem>>, vector<8x64xbf16>
      tpu.vector_store %arg12[%c0_83, %c0_84], %217 {strides = array<i32>} : memref<8x64xbf16, #tpu.memory_space<vmem>>, vector<8x64xbf16>,
    } else {
    }
    %c0_2 = arith.constant 0 : index
    %c0_3 = arith.constant 0 : index
    %c0_4 = arith.constant 0 : index
    %4 = vector.load %arg2[%c0_2, %c0_3, %c0_4] : memref<1x8x32xf32, #tpu.memory_space<vmem>>, vector<1x8x32xf32>
    %5 = vector.shape_cast %4 : vector<1x8x32xf32> to vector<8x32xf32>
    %6 = arith.truncf %5 : vector<8x32xf32> to vector<8x32xbf16>
    %7 = vector.extract_strided_slice %0 {offsets = [0, 0], sizes = [32, 32], strides = [1, 1]} : vector<32x96xbf16> to vector<32x32xbf16>
    %cst = arith.constant dense<0.000000e+00> : vector<8x32xf32>
    %8 = tpu.matmul %6, %7, %cst {dimension_numbers = #tpu.dot_dimension_numbers<[1], [0], [0], [1], [0, 0, 1, 1], [], []>} : vector<8x32xbf16>, vector<32x32xbf16>, vector<8x32xf32> -> vector<8x32xf32>
    %cst_5 = arith.constant 5.000000e-01 : f32
    %9 = vector.broadcast %cst_5 : f32 to vector<8x32xf32>
    %10 = arith.mulf %8, %9 : vector<8x32xf32>
    %11 = arith.truncf %10 : vector<8x32xf32> to vector<8x32xbf16>
    %c0_6 = arith.constant 0 : index
    %c0_7 = arith.constant 0 : index
    %12 = vector.load %arg12[%c0_6, %c0_7] : memref<8x64xbf16, #tpu.memory_space<vmem>>, vector<8x64xbf16>
    %13 = vector.extract_strided_slice %12 {offsets = [0, 0], sizes = [8, 32], strides = [1, 1]} : vector<8x64xbf16> to vector<8x32xbf16>
    %14 = vector.extract_strided_slice %12 {offsets = [0, 32], sizes = [8, 32], strides = [1, 1]} : vector<8x64xbf16> to vector<8x32xbf16>
    %15 = vector.extract_strided_slice %11 {offsets = [0, 0], sizes = [8, 4], strides = [1, 1]} : vector<8x32xbf16> to vector<8x4xbf16>
    %16 = vector.extract_strided_slice %13 {offsets = [0, 0], sizes = [8, 4], strides = [1, 1]} : vector<8x32xbf16> to vector<8x4xbf16>
    %17 = vector.extract_strided_slice %14 {offsets = [0, 0], sizes = [8, 4], strides = [1, 1]} : vector<8x32xbf16> to vector<8x4xbf16>
    %cst_8 = arith.constant dense<0.000000e+00> : vector<8x8xf32>
    %18 = tpu.matmul %15, %16, %cst_8 {dimension_numbers = #tpu.dot_dimension_numbers<[1], [1], [0], [0], [0, 0, 1, 0], [], []>} : vector<8x4xbf16>, vector<8x4xbf16>, vector<8x8xf32> -> vector<8x8xf32>
    %cst_9 = arith.constant dense<0xFF800000> : vector<8xf32>
    %19 = vector.multi_reduction <maximumf>, %18, %cst_9 [1] : vector<8x8xf32> to vector<8xf32>
    %20 = vector.shape_cast %19 : vector<8xf32> to vector<8x1xf32>
    %21 = vector.broadcast %20 : vector<8x1xf32> to vector<8x8xf32>
    %22 = arith.subf %18, %21 : vector<8x8xf32>
    %23 = math.exp %22 : vector<8x8xf32>
    %cst_10 = arith.constant dense<0.000000e+00> : vector<8xf32>
    %24 = vector.multi_reduction <add>, %23, %cst_10 [1] : vector<8x8xf32> to vector<8xf32>
    %25 = vector.shape_cast %24 : vector<8xf32> to vector<8x1xf32>
    %26 = tpu.reciprocal %25 {approx = true} : vector<8x1xf32> -> vector<8x1xf32>
    %27 = vector.broadcast %26 : vector<8x1xf32> to vector<8x8xf32>
    %28 = arith.mulf %23, %27 : vector<8x8xf32>
    %29 = arith.truncf %28 : vector<8x8xf32> to vector<8x8xbf16>
    %cst_11 = arith.constant dense<0.000000e+00> : vector<8x4xf32>
    %30 = tpu.matmul %29, %17, %cst_11 {dimension_numbers = #tpu.dot_dimension_numbers<[1], [0], [0], [1], [0, 0, 1, 1], [], []>} : vector<8x8xbf16>, vector<8x4xbf16>, vector<8x4xf32> -> vector<8x4xf32>
    %c0_12 = arith.constant 0 : index
    %c0_13 = arith.constant 0 : index
    %31 = vector.load %arg13[%c0_12, %c0_13] : memref<8x32xf32, #tpu.memory_space<vmem>>, vector<8x4xf32>
    tpu.vector_store %arg13[%c0_12, %c0_13], %30 {strides = array<i32>} : memref<8x32xf32, #tpu.memory_space<vmem>>, vector<8x4xf32>,
    %32 = vector.extract_strided_slice %11 {offsets = [0, 4], sizes = [8, 4], strides = [1, 1]} : vector<8x32xbf16> to vector<8x4xbf16>
    %33 = vector.extract_strided_slice %13 {offsets = [0, 4], sizes = [8, 4], strides = [1, 1]} : vector<8x32xbf16> to vector<8x4xbf16>
    %34 = vector.extract_strided_slice %14 {offsets = [0, 4], sizes = [8, 4], strides = [1, 1]} : vector<8x32xbf16> to vector<8x4xbf16>
    %cst_14 = arith.constant dense<0.000000e+00> : vector<8x8xf32>
    %35 = tpu.matmul %32, %33, %cst_14 {dimension_numbers = #tpu.dot_dimension_numbers<[1], [1], [0], [0], [0, 0, 1, 0], [], []>} : vector<8x4xbf16>, vector<8x4xbf16>, vector<8x8xf32> -> vector<8x8xf32>
    %cst_15 = arith.constant dense<0xFF800000> : vector<8xf32>
    %36 = vector.multi_reduction <maximumf>, %35, %cst_15 [1] : vector<8x8xf32> to vector<8xf32>
    %37 = vector.shape_cast %36 : vector<8xf32> to vector<8x1xf32>
    %38 = vector.broadcast %37 : vector<8x1xf32> to vector<8x8xf32>
    %39 = arith.subf %35, %38 : vector<8x8xf32>
    %40 = math.exp %39 : vector<8x8xf32>
    %cst_16 = arith.constant dense<0.000000e+00> : vector<8xf32>
    %41 = vector.multi_reduction <add>, %40, %cst_16 [1] : vector<8x8xf32> to vector<8xf32>
    %42 = vector.shape_cast %41 : vector<8xf32> to vector<8x1xf32>
    %43 = tpu.reciprocal %42 {approx = true} : vector<8x1xf32> -> vector<8x1xf32>
    %44 = vector.broadcast %43 : vector<8x1xf32> to vector<8x8xf32>
    %45 = arith.mulf %40, %44 : vector<8x8xf32>
    %46 = arith.truncf %45 : vector<8x8xf32> to vector<8x8xbf16>
    %cst_17 = arith.constant dense<0.000000e+00> : vector<8x4xf32>
    %47 = tpu.matmul %46, %34, %cst_17 {dimension_numbers = #tpu.dot_dimension_numbers<[1], [0], [0], [1], [0, 0, 1, 1], [], []>} : vector<8x8xbf16>, vector<8x4xbf16>, vector<8x4xf32> -> vector<8x4xf32>
    %c0_18 = arith.constant 0 : index
    %c4 = arith.constant 4 : index
    %48 = vector.load %arg13[%c0_18, %c4] : memref<8x32xf32, #tpu.memory_space<vmem>>, vector<8x4xf32>
    tpu.vector_store %arg13[%c0_18, %c4], %47 {strides = array<i32>} : memref<8x32xf32, #tpu.memory_space<vmem>>, vector<8x4xf32>,
    %49 = vector.extract_strided_slice %11 {offsets = [0, 8], sizes = [8, 4], strides = [1, 1]} : vector<8x32xbf16> to vector<8x4xbf16>
    %50 = vector.extract_strided_slice %13 {offsets = [0, 8], sizes = [8, 4], strides = [1, 1]} : vector<8x32xbf16> to vector<8x4xbf16>
    %51 = vector.extract_strided_slice %14 {offsets = [0, 8], sizes = [8, 4], strides = [1, 1]} : vector<8x32xbf16> to vector<8x4xbf16>
    %cst_19 = arith.constant dense<0.000000e+00> : vector<8x8xf32>
    %52 = tpu.matmul %49, %50, %cst_19 {dimension_numbers = #tpu.dot_dimension_numbers<[1], [1], [0], [0], [0, 0, 1, 0], [], []>} : vector<8x4xbf16>, vector<8x4xbf16>, vector<8x8xf32> -> vector<8x8xf32>
    %cst_20 = arith.constant dense<0xFF800000> : vector<8xf32>
    %53 = vector.multi_reduction <maximumf>, %52, %cst_20 [1] : vector<8x8xf32> to vector<8xf32>
    %54 = vector.shape_cast %53 : vector<8xf32> to vector<8x1xf32>
    %55 = vector.broadcast %54 : vector<8x1xf32> to vector<8x8xf32>
    %56 = arith.subf %52, %55 : vector<8x8xf32>
    %57 = math.exp %56 : vector<8x8xf32>
    %cst_21 = arith.constant dense<0.000000e+00> : vector<8xf32>
    %58 = vector.multi_reduction <add>, %57, %cst_21 [1] : vector<8x8xf32> to vector<8xf32>
    %59 = vector.shape_cast %58 : vector<8xf32> to vector<8x1xf32>
    %60 = tpu.reciprocal %59 {approx = true} : vector<8x1xf32> -> vector<8x1xf32>
    %61 = vector.broadcast %60 : vector<8x1xf32> to vector<8x8xf32>
    %62 = arith.mulf %57, %61 : vector<8x8xf32>
    %63 = arith.truncf %62 : vector<8x8xf32> to vector<8x8xbf16>
    %cst_22 = arith.constant dense<0.000000e+00> : vector<8x4xf32>
    %64 = tpu.matmul %63, %51, %cst_22 {dimension_numbers = #tpu.dot_dimension_numbers<[1], [0], [0], [1], [0, 0, 1, 1], [], []>} : vector<8x8xbf16>, vector<8x4xbf16>, vector<8x4xf32> -> vector<8x4xf32>
    %c0_23 = arith.constant 0 : index
    %c8 = arith.constant 8 : index
    %65 = vector.load %arg13[%c0_23, %c8] : memref<8x32xf32, #tpu.memory_space<vmem>>, vector<8x4xf32>
    tpu.vector_store %arg13[%c0_23, %c8], %64 {strides = array<i32>} : memref<8x32xf32, #tpu.memory_space<vmem>>, vector<8x4xf32>,
    %66 = vector.extract_strided_slice %11 {offsets = [0, 12], sizes = [8, 4], strides = [1, 1]} : vector<8x32xbf16> to vector<8x4xbf16>
    %67 = vector.extract_strided_slice %13 {offsets = [0, 12], sizes = [8, 4], strides = [1, 1]} : vector<8x32xbf16> to vector<8x4xbf16>
    %68 = vector.extract_strided_slice %14 {offsets = [0, 12], sizes = [8, 4], strides = [1, 1]} : vector<8x32xbf16> to vector<8x4xbf16>
    %cst_24 = arith.constant dense<0.000000e+00> : vector<8x8xf32>
    %69 = tpu.matmul %66, %67, %cst_24 {dimension_numbers = #tpu.dot_dimension_numbers<[1], [1], [0], [0], [0, 0, 1, 0], [], []>} : vector<8x4xbf16>, vector<8x4xbf16>, vector<8x8xf32> -> vector<8x8xf32>
    %cst_25 = arith.constant dense<0xFF800000> : vector<8xf32>
    %70 = vector.multi_reduction <maximumf>, %69, %cst_25 [1] : vector<8x8xf32> to vector<8xf32>
    %71 = vector.shape_cast %70 : vector<8xf32> to vector<8x1xf32>
    %72 = vector.broadcast %71 : vector<8x1xf32> to vector<8x8xf32>
    %73 = arith.subf %69, %72 : vector<8x8xf32>
    %74 = math.exp %73 : vector<8x8xf32>
    %cst_26 = arith.constant dense<0.000000e+00> : vector<8xf32>
    %75 = vector.multi_reduction <add>, %74, %cst_26 [1] : vector<8x8xf32> to vector<8xf32>
    %76 = vector.shape_cast %75 : vector<8xf32> to vector<8x1xf32>
    %77 = tpu.reciprocal %76 {approx = true} : vector<8x1xf32> -> vector<8x1xf32>
    %78 = vector.broadcast %77 : vector<8x1xf32> to vector<8x8xf32>
    %79 = arith.mulf %74, %78 : vector<8x8xf32>
    %80 = arith.truncf %79 : vector<8x8xf32> to vector<8x8xbf16>
    %cst_27 = arith.constant dense<0.000000e+00> : vector<8x4xf32>
    %81 = tpu.matmul %80, %68, %cst_27 {dimension_numbers = #tpu.dot_dimension_numbers<[1], [0], [0], [1], [0, 0, 1, 1], [], []>} : vector<8x8xbf16>, vector<8x4xbf16>, vector<8x4xf32> -> vector<8x4xf32>
    %c0_28 = arith.constant 0 : index
    %c12 = arith.constant 12 : index
    %82 = vector.load %arg13[%c0_28, %c12] : memref<8x32xf32, #tpu.memory_space<vmem>>, vector<8x4xf32>
    tpu.vector_store %arg13[%c0_28, %c12], %81 {strides = array<i32>} : memref<8x32xf32, #tpu.memory_space<vmem>>, vector<8x4xf32>,
    %83 = vector.extract_strided_slice %11 {offsets = [0, 16], sizes = [8, 4], strides = [1, 1]} : vector<8x32xbf16> to vector<8x4xbf16>
    %84 = vector.extract_strided_slice %13 {offsets = [0, 16], sizes = [8, 4], strides = [1, 1]} : vector<8x32xbf16> to vector<8x4xbf16>
    %85 = vector.extract_strided_slice %14 {offsets = [0, 16], sizes = [8, 4], strides = [1, 1]} : vector<8x32xbf16> to vector<8x4xbf16>
    %cst_29 = arith.constant dense<0.000000e+00> : vector<8x8xf32>
    %86 = tpu.matmul %83, %84, %cst_29 {dimension_numbers = #tpu.dot_dimension_numbers<[1], [1], [0], [0], [0, 0, 1, 0], [], []>} : vector<8x4xbf16>, vector<8x4xbf16>, vector<8x8xf32> -> vector<8x8xf32>
    %cst_30 = arith.constant dense<0xFF800000> : vector<8xf32>
    %87 = vector.multi_reduction <maximumf>, %86, %cst_30 [1] : vector<8x8xf32> to vector<8xf32>
    %88 = vector.shape_cast %87 : vector<8xf32> to vector<8x1xf32>
    %89 = vector.broadcast %88 : vector<8x1xf32> to vector<8x8xf32>
    %90 = arith.subf %86, %89 : vector<8x8xf32>
    %91 = math.exp %90 : vector<8x8xf32>
    %cst_31 = arith.constant dense<0.000000e+00> : vector<8xf32>
    %92 = vector.multi_reduction <add>, %91, %cst_31 [1] : vector<8x8xf32> to vector<8xf32>
    %93 = vector.shape_cast %92 : vector<8xf32> to vector<8x1xf32>
    %94 = tpu.reciprocal %93 {approx = true} : vector<8x1xf32> -> vector<8x1xf32>
    %95 = vector.broadcast %94 : vector<8x1xf32> to vector<8x8xf32>
    %96 = arith.mulf %91, %95 : vector<8x8xf32>
    %97 = arith.truncf %96 : vector<8x8xf32> to vector<8x8xbf16>
    %cst_32 = arith.constant dense<0.000000e+00> : vector<8x4xf32>
    %98 = tpu.matmul %97, %85, %cst_32 {dimension_numbers = #tpu.dot_dimension_numbers<[1], [0], [0], [1], [0, 0, 1, 1], [], []>} : vector<8x8xbf16>, vector<8x4xbf16>, vector<8x4xf32> -> vector<8x4xf32>
    %c0_33 = arith.constant 0 : index
    %c16 = arith.constant 16 : index
    %99 = vector.load %arg13[%c0_33, %c16] : memref<8x32xf32, #tpu.memory_space<vmem>>, vector<8x4xf32>
    tpu.vector_store %arg13[%c0_33, %c16], %98 {strides = array<i32>} : memref<8x32xf32, #tpu.memory_space<vmem>>, vector<8x4xf32>,
    %100 = vector.extract_strided_slice %11 {offsets = [0, 20], sizes = [8, 4], strides = [1, 1]} : vector<8x32xbf16> to vector<8x4xbf16>
    %101 = vector.extract_strided_slice %13 {offsets = [0, 20], sizes = [8, 4], strides = [1, 1]} : vector<8x32xbf16> to vector<8x4xbf16>
    %102 = vector.extract_strided_slice %14 {offsets = [0, 20], sizes = [8, 4], strides = [1, 1]} : vector<8x32xbf16> to vector<8x4xbf16>
    %cst_34 = arith.constant dense<0.000000e+00> : vector<8x8xf32>
    %103 = tpu.matmul %100, %101, %cst_34 {dimension_numbers = #tpu.dot_dimension_numbers<[1], [1], [0], [0], [0, 0, 1, 0], [], []>} : vector<8x4xbf16>, vector<8x4xbf16>, vector<8x8xf32> -> vector<8x8xf32>
    %cst_35 = arith.constant dense<0xFF800000> : vector<8xf32>
    %104 = vector.multi_reduction <maximumf>, %103, %cst_35 [1] : vector<8x8xf32> to vector<8xf32>
    %105 = vector.shape_cast %104 : vector<8xf32> to vector<8x1xf32>
    %106 = vector.broadcast %105 : vector<8x1xf32> to vector<8x8xf32>
    %107 = arith.subf %103, %106 : vector<8x8xf32>
    %108 = math.exp %107 : vector<8x8xf32>
    %cst_36 = arith.constant dense<0.000000e+00> : vector<8xf32>
    %109 = vector.multi_reduction <add>, %108, %cst_36 [1] : vector<8x8xf32> to vector<8xf32>
    %110 = vector.shape_cast %109 : vector<8xf32> to vector<8x1xf32>
    %111 = tpu.reciprocal %110 {approx = true} : vector<8x1xf32> -> vector<8x1xf32>
    %112 = vector.broadcast %111 : vector<8x1xf32> to vector<8x8xf32>
    %113 = arith.mulf %108, %112 : vector<8x8xf32>
    %114 = arith.truncf %113 : vector<8x8xf32> to vector<8x8xbf16>
    %cst_37 = arith.constant dense<0.000000e+00> : vector<8x4xf32>
    %115 = tpu.matmul %114, %102, %cst_37 {dimension_numbers = #tpu.dot_dimension_numbers<[1], [0], [0], [1], [0, 0, 1, 1], [], []>} : vector<8x8xbf16>, vector<8x4xbf16>, vector<8x4xf32> -> vector<8x4xf32>
    %c0_38 = arith.constant 0 : index
    %c20 = arith.constant 20 : index
    %116 = vector.load %arg13[%c0_38, %c20] : memref<8x32xf32, #tpu.memory_space<vmem>>, vector<8x4xf32>
    tpu.vector_store %arg13[%c0_38, %c20], %115 {strides = array<i32>} : memref<8x32xf32, #tpu.memory_space<vmem>>, vector<8x4xf32>,
    %117 = vector.extract_strided_slice %11 {offsets = [0, 24], sizes = [8, 4], strides = [1, 1]} : vector<8x32xbf16> to vector<8x4xbf16>
    %118 = vector.extract_strided_slice %13 {offsets = [0, 24], sizes = [8, 4], strides = [1, 1]} : vector<8x32xbf16> to vector<8x4xbf16>
    %119 = vector.extract_strided_slice %14 {offsets = [0, 24], sizes = [8, 4], strides = [1, 1]} : vector<8x32xbf16> to vector<8x4xbf16>
    %cst_39 = arith.constant dense<0.000000e+00> : vector<8x8xf32>
    %120 = tpu.matmul %117, %118, %cst_39 {dimension_numbers = #tpu.dot_dimension_numbers<[1], [1], [0], [0], [0, 0, 1, 0], [], []>} : vector<8x4xbf16>, vector<8x4xbf16>, vector<8x8xf32> -> vector<8x8xf32>
    %cst_40 = arith.constant dense<0xFF800000> : vector<8xf32>
    %121 = vector.multi_reduction <maximumf>, %120, %cst_40 [1] : vector<8x8xf32> to vector<8xf32>
    %122 = vector.shape_cast %121 : vector<8xf32> to vector<8x1xf32>
    %123 = vector.broadcast %122 : vector<8x1xf32> to vector<8x8xf32>
    %124 = arith.subf %120, %123 : vector<8x8xf32>
    %125 = math.exp %124 : vector<8x8xf32>
    %cst_41 = arith.constant dense<0.000000e+00> : vector<8xf32>
    %126 = vector.multi_reduction <add>, %125, %cst_41 [1] : vector<8x8xf32> to vector<8xf32>
    %127 = vector.shape_cast %126 : vector<8xf32> to vector<8x1xf32>
    %128 = tpu.reciprocal %127 {approx = true} : vector<8x1xf32> -> vector<8x1xf32>
    %129 = vector.broadcast %128 : vector<8x1xf32> to vector<8x8xf32>
    %130 = arith.mulf %125, %129 : vector<8x8xf32>
    %131 = arith.truncf %130 : vector<8x8xf32> to vector<8x8xbf16>
    %cst_42 = arith.constant dense<0.000000e+00> : vector<8x4xf32>
    %132 = tpu.matmul %131, %119, %cst_42 {dimension_numbers = #tpu.dot_dimension_numbers<[1], [0], [0], [1], [0, 0, 1, 1], [], []>} : vector<8x8xbf16>, vector<8x4xbf16>, vector<8x4xf32> -> vector<8x4xf32>
    %c0_43 = arith.constant 0 : index
    %c24 = arith.constant 24 : index
    %133 = vector.load %arg13[%c0_43, %c24] : memref<8x32xf32, #tpu.memory_space<vmem>>, vector<8x4xf32>
    tpu.vector_store %arg13[%c0_43, %c24], %132 {strides = array<i32>} : memref<8x32xf32, #tpu.memory_space<vmem>>, vector<8x4xf32>,
    %134 = vector.extract_strided_slice %11 {offsets = [0, 28], sizes = [8, 4], strides = [1, 1]} : vector<8x32xbf16> to vector<8x4xbf16>
    %135 = vector.extract_strided_slice %13 {offsets = [0, 28], sizes = [8, 4], strides = [1, 1]} : vector<8x32xbf16> to vector<8x4xbf16>
    %136 = vector.extract_strided_slice %14 {offsets = [0, 28], sizes = [8, 4], strides = [1, 1]} : vector<8x32xbf16> to vector<8x4xbf16>
    %cst_44 = arith.constant dense<0.000000e+00> : vector<8x8xf32>
    %137 = tpu.matmul %134, %135, %cst_44 {dimension_numbers = #tpu.dot_dimension_numbers<[1], [1], [0], [0], [0, 0, 1, 0], [], []>} : vector<8x4xbf16>, vector<8x4xbf16>, vector<8x8xf32> -> vector<8x8xf32>
    %cst_45 = arith.constant dense<0xFF800000> : vector<8xf32>
    %138 = vector.multi_reduction <maximumf>, %137, %cst_45 [1] : vector<8x8xf32> to vector<8xf32>
    %139 = vector.shape_cast %138 : vector<8xf32> to vector<8x1xf32>
    %140 = vector.broadcast %139 : vector<8x1xf32> to vector<8x8xf32>
    %141 = arith.subf %137, %140 : vector<8x8xf32>
    %142 = math.exp %141 : vector<8x8xf32>
    %cst_46 = arith.constant dense<0.000000e+00> : vector<8xf32>
    %143 = vector.multi_reduction <add>, %142, %cst_46 [1] : vector<8x8xf32> to vector<8xf32>
    %144 = vector.shape_cast %143 : vector<8xf32> to vector<8x1xf32>
    %145 = tpu.reciprocal %144 {approx = true} : vector<8x1xf32> -> vector<8x1xf32>
    %146 = vector.broadcast %145 : vector<8x1xf32> to vector<8x8xf32>
    %147 = arith.mulf %142, %146 : vector<8x8xf32>
    %148 = arith.truncf %147 : vector<8x8xf32> to vector<8x8xbf16>
    %cst_47 = arith.constant dense<0.000000e+00> : vector<8x4xf32>
    %149 = tpu.matmul %148, %136, %cst_47 {dimension_numbers = #tpu.dot_dimension_numbers<[1], [0], [0], [1], [0, 0, 1, 1], [], []>} : vector<8x8xbf16>, vector<8x4xbf16>, vector<8x4xf32> -> vector<8x4xf32>
    %c0_48 = arith.constant 0 : index
    %c28 = arith.constant 28 : index
    %150 = vector.load %arg13[%c0_48, %c28] : memref<8x32xf32, #tpu.memory_space<vmem>>, vector<8x4xf32>
    tpu.vector_store %arg13[%c0_48, %c28], %149 {strides = array<i32>} : memref<8x32xf32, #tpu.memory_space<vmem>>, vector<8x4xf32>,
    %c0_49 = arith.constant 0 : index
    %c0_50 = arith.constant 0 : index
    %151 = vector.load %arg13[%c0_49, %c0_50] : memref<8x32xf32, #tpu.memory_space<vmem>>, vector<8x32xf32>
    %152 = arith.addf %151, %5 : vector<8x32xf32>
    %cst_51 = arith.constant dense<0.000000e+00> : vector<8xf32>
    %153 = vector.multi_reduction <add>, %152, %cst_51 [1] : vector<8x32xf32> to vector<8xf32>
    %154 = vector.shape_cast %153 : vector<8xf32> to vector<8x1xf32>
    %cst_52 = arith.constant 3.200000e+01 : f32
    %155 = vector.broadcast %cst_52 : f32 to vector<8x1xf32>
    %156 = arith.divf %154, %155 : vector<8x1xf32>
    %157 = vector.broadcast %156 : vector<8x1xf32> to vector<8x32xf32>
    %158 = arith.subf %152, %157 : vector<8x32xf32>
    %159 = arith.mulf %158, %158 : vector<8x32xf32>
    %cst_53 = arith.constant dense<0.000000e+00> : vector<8xf32>
    %160 = vector.multi_reduction <add>, %159, %cst_53 [1] : vector<8x32xf32> to vector<8xf32>
    %161 = vector.shape_cast %160 : vector<8xf32> to vector<8x1xf32>
    %cst_54 = arith.constant 3.200000e+01 : f32
    %162 = vector.broadcast %cst_54 : f32 to vector<8x1xf32>
    %163 = arith.divf %161, %162 : vector<8x1xf32>
    %164 = vector.broadcast %156 : vector<8x1xf32> to vector<8x32xf32>
    %165 = arith.subf %152, %164 : vector<8x32xf32>
    %cst_55 = arith.constant 9.99999974E-6 : f32
    %166 = vector.broadcast %cst_55 : f32 to vector<8x1xf32>
    %167 = arith.addf %163, %166 : vector<8x1xf32>
    %168 = math.rsqrt %167 : vector<8x1xf32>
    %169 = vector.broadcast %168 : vector<8x1xf32> to vector<8x32xf32>
    %170 = arith.mulf %165, %169 : vector<8x32xf32>
    %c0_56 = arith.constant 0 : index
    %c0_57 = arith.constant 0 : index
    %171 = vector.load %arg7[%c0_56, %c0_57] : memref<1x32xf32, #tpu.memory_space<vmem>>, vector<1x32xf32>
    %172 = vector.broadcast %171 : vector<1x32xf32> to vector<8x32xf32>
    %173 = arith.mulf %170, %172 : vector<8x32xf32>
    %c0_58 = arith.constant 0 : index
    %c0_59 = arith.constant 0 : index
    %174 = vector.load %arg8[%c0_58, %c0_59] : memref<1x32xf32, #tpu.memory_space<vmem>>, vector<1x32xf32>
    %175 = vector.broadcast %174 : vector<1x32xf32> to vector<8x32xf32>
    %176 = arith.addf %173, %175 : vector<8x32xf32>
    %177 = arith.truncf %176 : vector<8x32xf32> to vector<8x32xbf16>
    %c0_60 = arith.constant 0 : index
    %c0_61 = arith.constant 0 : index
    %178 = vector.load %arg5[%c0_60, %c0_61] : memref<32x64xbf16, #tpu.memory_space<vmem>>, vector<32x64xbf16>
    %cst_62 = arith.constant dense<0.000000e+00> : vector<8x64xf32>
    %179 = tpu.matmul %177, %178, %cst_62 {dimension_numbers = #tpu.dot_dimension_numbers<[1], [0], [0], [1], [0, 0, 1, 1], [], []>} : vector<8x32xbf16>, vector<32x64xbf16>, vector<8x64xf32> -> vector<8x64xf32>
    %cst_63 = arith.constant 0.000000e+00 : f32
    %180 = vector.broadcast %cst_63 : f32 to vector<8x64xf32>
    %181 = arith.maximumf %179, %180 : vector<8x64xf32>
    %182 = arith.truncf %181 : vector<8x64xf32> to vector<8x64xbf16>
    %c0_64 = arith.constant 0 : index
    %c0_65 = arith.constant 0 : index
    %183 = vector.load %arg6[%c0_64, %c0_65] : memref<64x32xbf16, #tpu.memory_space<vmem>>, vector<64x32xbf16>
    %cst_66 = arith.constant dense<0.000000e+00> : vector<8x32xf32>
    %184 = tpu.matmul %182, %183, %cst_66 {dimension_numbers = #tpu.dot_dimension_numbers<[1], [0], [0], [1], [0, 0, 1, 1], [], []>} : vector<8x64xbf16>, vector<64x32xbf16>, vector<8x32xf32> -> vector<8x32xf32>
    %185 = arith.addf %184, %176 : vector<8x32xf32>
    %cst_67 = arith.constant dense<0.000000e+00> : vector<8xf32>
    %186 = vector.multi_reduction <add>, %185, %cst_67 [1] : vector<8x32xf32> to vector<8xf32>
    %187 = vector.shape_cast %186 : vector<8xf32> to vector<8x1xf32>
    %cst_68 = arith.constant 3.200000e+01 : f32
    %188 = vector.broadcast %cst_68 : f32 to vector<8x1xf32>
    %189 = arith.divf %187, %188 : vector<8x1xf32>
    %190 = vector.broadcast %189 : vector<8x1xf32> to vector<8x32xf32>
    %191 = arith.subf %185, %190 : vector<8x32xf32>
    %192 = arith.mulf %191, %191 : vector<8x32xf32>
    %cst_69 = arith.constant dense<0.000000e+00> : vector<8xf32>
    %193 = vector.multi_reduction <add>, %192, %cst_69 [1] : vector<8x32xf32> to vector<8xf32>
    %194 = vector.shape_cast %193 : vector<8xf32> to vector<8x1xf32>
    %cst_70 = arith.constant 3.200000e+01 : f32
    %195 = vector.broadcast %cst_70 : f32 to vector<8x1xf32>
    %196 = arith.divf %194, %195 : vector<8x1xf32>
    %197 = vector.broadcast %189 : vector<8x1xf32> to vector<8x32xf32>
    %198 = arith.subf %185, %197 : vector<8x32xf32>
    %cst_71 = arith.constant 9.99999974E-6 : f32
    %199 = vector.broadcast %cst_71 : f32 to vector<8x1xf32>
    %200 = arith.addf %196, %199 : vector<8x1xf32>
    %201 = math.rsqrt %200 : vector<8x1xf32>
    %202 = vector.broadcast %201 : vector<8x1xf32> to vector<8x32xf32>
    %203 = arith.mulf %198, %202 : vector<8x32xf32>
    %c0_72 = arith.constant 0 : index
    %c0_73 = arith.constant 0 : index
    %204 = vector.load %arg9[%c0_72, %c0_73] : memref<1x32xf32, #tpu.memory_space<vmem>>, vector<1x32xf32>
    %205 = vector.broadcast %204 : vector<1x32xf32> to vector<8x32xf32>
    %206 = arith.mulf %203, %205 : vector<8x32xf32>
    %c0_74 = arith.constant 0 : index
    %c0_75 = arith.constant 0 : index
    %207 = vector.load %arg10[%c0_74, %c0_75] : memref<1x32xf32, #tpu.memory_space<vmem>>, vector<1x32xf32>
    %208 = vector.broadcast %207 : vector<1x32xf32> to vector<8x32xf32>
    %209 = arith.addf %206, %208 : vector<8x32xf32>
    %c0_76 = arith.constant 0 : index
    %c0_77 = arith.constant 0 : index
    %c0_78 = arith.constant 0 : index
    %210 = vector.load %arg11[%c0_76, %c0_77, %c0_78] : memref<1x8x32xf32, #tpu.memory_space<vmem>>, vector<1x8x32xf32>
    %211 = vector.shape_cast %210 : vector<1x8x32xf32> to vector<8x32xf32>
    %212 = vector.shape_cast %209 : vector<8x32xf32> to vector<1x8x32xf32>
    tpu.vector_store %arg11[%c0_76, %c0_77, %c0_78], %212 {strides = array<i32>} : memref<1x8x32xf32, #tpu.memory_space<vmem>>, vector<1x8x32xf32>,
    return
  }
  func.func @transform_0(%arg0: i32, %arg1: i32) -> (i32, i32, i32) {
    %c0_i32 = arith.constant 0 : i32
    %c0_i32_0 = arith.constant 0 : i32
    return %arg0, %arg1, %c0_i32 : i32, i32, i32
  }
  func.func @transform_1(%arg0: i32, %arg1: i32) -> (i32, i32, i32) {
    %c0_i32 = arith.constant 0 : i32
    %c0_i32_0 = arith.constant 0 : i32
    %c0_i32_1 = arith.constant 0 : i32
    return %arg0, %c0_i32, %c0_i32_0 : i32, i32, i32
  }
  func.func @transform_2(%arg0: i32, %arg1: i32) -> (i32, i32) {
    %c0_i32 = arith.constant 0 : i32
    %c0_i32_0 = arith.constant 0 : i32
    %c0_i32_1 = arith.constant 0 : i32
    return %c0_i32, %c0_i32_0 : i32, i32
  }
  func.func @transform_3(%arg0: i32, %arg1: i32) -> (i32, i32) {
    %c0_i32 = arith.constant 0 : i32
    %c0_i32_0 = arith.constant 0 : i32
    %c0_i32_1 = arith.constant 0 : i32
    return %c0_i32, %c0_i32_0 : i32, i32
  }
  func.func @transform_4(%arg0: i32, %arg1: i32) -> (i32, i32) {
    %c0_i32 = arith.constant 0 : i32
    %c0_i32_0 = arith.constant 0 : i32
    %c0_i32_1 = arith.constant 0 : i32
    return %c0_i32, %c0_i32_0 : i32, i32
  }
  func.func @transform_5(%arg0: i32, %arg1: i32) -> (i32, i32) {
    %c0_i32 = arith.constant 0 : i32
    %c0_i32_0 = arith.constant 0 : i32
    %c0_i32_1 = arith.constant 0 : i32
    return %c0_i32, %c0_i32_0 : i32, i32
  }
  func.func @transform_6(%arg0: i32, %arg1: i32) -> (i32, i32) {
    %c0_i32 = arith.constant 0 : i32
    %c0_i32_0 = arith.constant 0 : i32
    %c0_i32_1 = arith.constant 0 : i32
    return %c0_i32, %c0_i32_0 : i32, i32
  }
  func.func @transform_7(%arg0: i32, %arg1: i32) -> (i32, i32) {
    %c0_i32 = arith.constant 0 : i32
    %c0_i32_0 = arith.constant 0 : i32
    %c0_i32_1 = arith.constant 0 : i32
    return %c0_i32, %c0_i32_0 : i32, i32
  }
  func.func @transform_8(%arg0: i32, %arg1: i32) -> (i32, i32) {
    %c0_i32 = arith.constant 0 : i32
    %c0_i32_0 = arith.constant 0 : i32
    %c0_i32_1 = arith.constant 0 : i32
    return %c0_i32, %c0_i32_0 : i32, i32
  }
  func.func @transform_9(%arg0: i32, %arg1: i32) -> (i32, i32, i32) {
    %c0_i32 = arith.constant 0 : i32
    %c0_i32_0 = arith.constant 0 : i32
    return %arg0, %arg1, %c0_i32 : i32, i32, i32
  }
}

</mosaic_0001>

<llo_original>
// kernel: tpu_custom_call.1
$region0: #{tpu_custom_call.1}
  #allocation0 [shape = 'u32[]', space=smem, size = 0x4, offset = 0x4, fixed_abs, tag = 'smem constant byte address 0x4 - core index']
  #allocation1 [shape = 'u32[144,128]{1,0:T(1,128)}', space=vmem, size = 0x12000, scoped, tag = 'internal scratch']
  #allocation2 [shape = 'bf16[8,64]{1,0:T(8,128)(2,1)}', space=vmem, size = 0x800, scoped, tag = 'scratch operand']
  #allocation3 [shape = 'f32[8,32]{1,0:T(8,128)}', space=vmem, size = 0x1000, scoped, tag = 'scratch operand']
  %s0 = inlined_call_operand.vmem [shape: f32[2,8,32], index: 0, kind: input, shape index: {}]
  %s1 = inlined_call_operand.hbm [shape: bf16[2,8,32], index: 1, kind: input, shape index: {}]
  %s2 = inlined_call_operand.vmem [shape: bf16[32,96], index: 2, kind: input, shape index: {}]
  %s3 = inlined_call_operand.vmem [shape: bf16[32,64], index: 3, kind: input, shape index: {}]
  %s4 = inlined_call_operand.vmem [shape: bf16[64,32], index: 4, kind: input, shape index: {}]
  %s5 = inlined_call_operand.vmem [shape: f32[1,32], index: 5, kind: input, shape index: {}]
  %s6 = inlined_call_operand.vmem [shape: f32[1,32], index: 6, kind: input, shape index: {}]
  %s7 = inlined_call_operand.vmem [shape: f32[1,32], index: 7, kind: input, shape index: {}]
  %s8 = inlined_call_operand.vmem [shape: f32[1,32], index: 8, kind: input, shape index: {}]
  %s9 = inlined_call_operand.hbm [shape: f32[2,8,32], index: 9, kind: output, shape index: {}]
  %s10 = sld [smem:[#allocation0]]
  $region77: #{tpu_custom_call.1} parent=0
    _
  %s12 = ssub.s32 1, %s10
  %s13 = scalar_select 0, %s12, %s10
  $region1: #{tpu_custom_call.1} parent=0
    #allocation4 [shape = 'u8[4096]{0}', space=vmem, size = 0x1000, scoped, tag = 'input window, operand 1']
    #allocation5 [shape = 's32[2]{0}', space=sflag, size = 0x8, scoped, tag = 'scoped memory for tpu_custom_call.1']
    #allocation6 [shape = 's32[2]{0}', space=sflag, size = 0x8, scoped, tag = 'scoped memory for tpu_custom_call.1']
    #allocation7 [shape = 'u8[8192]{0}', space=vmem, size = 0x2000, scoped, tag = 'output window, operand 0']
    %14 = vsyncpa [#allocation5], 0
    %s15 = scalar_lea.sflag [#allocation5], 1
    %16 = vsyncpa %s15, 0
    %17 = vsyncpa [#allocation6], 0
    %s18 = scalar_lea.sflag [#allocation6], 1
    %19 = vsyncpa %s18, 0
    loop: start=0, step=1, limit=4
    $region2: #{tpu_custom_call.1} parent=1 // loop_pre_header
      _
    $region3: #{tpu_custom_call.1} parent=1 // loop_header
      %s21 = sphi 0, %s25
      %p22 = scmp.ge.s32.totalorder %s21, 4
      %s28 = sphi 0, %s40
      %s29 = sphi 0, %s36
      %s30 = sphi 0, %s28
      %s31 = sphi 0, %s29
      %s32 = sphi 0, %s30
      %s33 = sphi 0, %s31
      %s45 = sphi 0, %s47
      %s48 = sphi 0, %s45
      %s49 = sphi 0, %s48
      %s65 = sphi 0, %s49
      %s71 = sphi 0, %s73
      %s74 = sphi 0, %s71
      %s75 = sphi 0, %s74
      %s91 = sphi 0, %s75
      %s95 = sphi 0, %s95
      %s97 = sphi 0, %s95
      %s98 = sphi 0, %s97
      %s112 = sphi 0, %s98
      %s116 = sphi 0, %s116
      %s118 = sphi 0, %s116
      %s119 = sphi 0, %s118
      %s133 = sphi 0, %s119
      %s137 = sphi 0, %s137
      %s139 = sphi 0, %s137
      %s140 = sphi 0, %s139
      %s154 = sphi 0, %s140
      %s158 = sphi 0, %s158
      %s160 = sphi 0, %s158
      %s161 = sphi 0, %s160
      %s175 = sphi 0, %s161
      %s179 = sphi 0, %s179
      %s181 = sphi 0, %s179
      %s182 = sphi 0, %s181
      %s196 = sphi 0, %s182
      %s200 = sphi 0, %s200
      %s202 = sphi 0, %s200
      %s203 = sphi 0, %s202
      %s217 = sphi 0, %s203
      %s221 = sphi 0, %s221
      %s223 = sphi 0, %s221
      %s224 = sphi 0, %s223
      %s238 = sphi 0, %s224
      %s246 = sphi 0, %s248
      %s249 = sphi 0, %s246
      %s250 = sphi 0, %s249
      %s266 = sphi 0, %s250
    $region4: #{tpu_custom_call.1} parent=1 // loop_header_branch
      %24 = sbr.rel (%p22) target = $region8
    $region5: #{tpu_custom_call.1} parent=1 // loop_body
      %s26 = ssub.s32 %s21, 1
      %s27 = ssub.s32 %s21, 2
      %s34 = sadd.s32 1, %s29
      %p35 = scmp.ge.s32.totalorder %s34, 1
      %s36 = scalar_select %p35, 0, %s34
      %s37 = sadd.s32 1, %s28
      %s38 = scalar_select %p35, %s37, %s28
      %p39 = scmp.ge.s32.totalorder %s38, 2
      %s40 = scalar_select %p39, 0, %s38
      %s41 = ssub.s32 %s28, %s40
      %s42 = ssub.s32 %s29, %s36
      %s43 = sor.u32 %s41, %s42
      %p44 = scmp.eq.s32.totalorder %s43, 0
      %s46 = sadd.s32 %s45, 1
      %s47 = scalar_select %p44, %s45, %s46
      %p50 = pneg %p44
      %p51 = scmp.eq.s32.totalorder %s21, 1
      %p52 = por %p50, %p51
      %p53 = scmp.ne.s32.totalorder %s45, %s48
      %p54 = scmp.eq.s32.totalorder %s21, 0
      %p55 = por %p53, %p54
      %p56 = scmp.ne.s32.totalorder %s45, %s48
      %p57 = scmp.eq.s32.totalorder %s26, 1
      %p58 = por %p56, %p57
      %p59 = scmp.ne.s32.totalorder %s48, %s49
      %p60 = scmp.eq.s32.totalorder %s26, 0
      %p61 = por %p59, %p60
      %p62 = scmp.ne.s32.totalorder %s48, %s49
      %p63 = scmp.eq.s32.totalorder %s27, 1
      %p64 = por %p62, %p63
      %p66 = scmp.ne.s32.totalorder %s49, %s65
      %p67 = scmp.eq.s32.totalorder %s27, 0
      %p68 = por %p66, %p67
      %s69 = ssub.s32 %s28, %s40
      %p70 = scmp.eq.s32.totalorder %s69, 0
      %s72 = sadd.s32 %s71, 1
      %s73 = scalar_select %p70, %s71, %s72
      %p76 = pneg %p70
      %p77 = scmp.eq.s32.totalorder %s21, 1
      %p78 = por %p76, %p77
      %p79 = scmp.ne.s32.totalorder %s71, %s74
      %p80 = scmp.eq.s32.totalorder %s21, 0
      %p81 = por %p79, %p80
      %p82 = scmp.ne.s32.totalorder %s71, %s74
      %p83 = scmp.eq.s32.totalorder %s26, 1
      %p84 = por %p82, %p83
      %p85 = scmp.ne.s32.totalorder %s74, %s75
      %p86 = scmp.eq.s32.totalorder %s26, 0
      %p87 = por %p85, %p86
      %p88 = scmp.ne.s32.totalorder %s74, %s75
      %p89 = scmp.eq.s32.totalorder %s27, 1
      %p90 = por %p88, %p89
      %p92 = scmp.ne.s32.totalorder %s75, %s91
      %p93 = scmp.eq.s32.totalorder %s27, 0
      %p94 = por %p92, %p93
      %s96 = sadd.s32 %s95, 1
      %p99 = scmp.eq.s32.totalorder %s21, 1
      %p100 = scmp.ne.s32.totalorder %s95, %s97
      %p101 = scmp.eq.s32.totalorder %s21, 0
      %p102 = por %p100, %p101
      %p103 = scmp.ne.s32.totalorder %s95, %s97
      %p104 = scmp.eq.s32.totalorder %s26, 1
      %p105 = por %p103, %p104
      %p106 = scmp.ne.s32.totalorder %s97, %s98
      %p107 = scmp.eq.s32.totalorder %s26, 0
      %p108 = por %p106, %p107
      %p109 = scmp.ne.s32.totalorder %s97, %s98
      %p110 = scmp.eq.s32.totalorder %s27, 1
      %p111 = por %p109, %p110
      %p113 = scmp.ne.s32.totalorder %s98, %s112
      %p114 = scmp.eq.s32.totalorder %s27, 0
      %p115 = por %p113, %p114
      %s117 = sadd.s32 %s116, 1
      %p120 = scmp.eq.s32.totalorder %s21, 1
      %p121 = scmp.ne.s32.totalorder %s116, %s118
      %p122 = scmp.eq.s32.totalorder %s21, 0
      %p123 = por %p121, %p122
      %p124 = scmp.ne.s32.totalorder %s116, %s118
      %p125 = scmp.eq.s32.totalorder %s26, 1
      %p126 = por %p124, %p125
      %p127 = scmp.ne.s32.totalorder %s118, %s119
      %p128 = scmp.eq.s32.totalorder %s26, 0
      %p129 = por %p127, %p128
      %p130 = scmp.ne.s32.totalorder %s118, %s119
      %p131 = scmp.eq.s32.totalorder %s27, 1
      %p132 = por %p130, %p131
      %p134 = scmp.ne.s32.totalorder %s119, %s133
      %p135 = scmp.eq.s32.totalorder %s27, 0
      %p136 = por %p134, %p135
      %s138 = sadd.s32 %s137, 1
      %p141 = scmp.eq.s32.totalorder %s21, 1
      %p142 = scmp.ne.s32.totalorder %s137, %s139
      %p143 = scmp.eq.s32.totalorder %s21, 0
      %p144 = por %p142, %p143
      %p145 = scmp.ne.s32.totalorder %s137, %s139
      %p146 = scmp.eq.s32.totalorder %s26, 1
      %p147 = por %p145, %p146
      %p148 = scmp.ne.s32.totalorder %s139, %s140
      %p149 = scmp.eq.s32.totalorder %s26, 0
      %p150 = por %p148, %p149
      %p151 = scmp.ne.s32.totalorder %s139, %s140
      %p152 = scmp.eq.s32.totalorder %s27, 1
      %p153 = por %p151, %p152
      %p155 = scmp.ne.s32.totalorder %s140, %s154
      %p156 = scmp.eq.s32.totalorder %s27, 0
      %p157 = por %p155, %p156
      %s159 = sadd.s32 %s158, 1
      %p162 = scmp.eq.s32.totalorder %s21, 1
      %p163 = scmp.ne.s32.totalorder %s158, %s160
      %p164 = scmp.eq.s32.totalorder %s21, 0
      %p165 = por %p163, %p164
      %p166 = scmp.ne.s32.totalorder %s158, %s160
      %p167 = scmp.eq.s32.totalorder %s26, 1
      %p168 = por %p166, %p167
      %p169 = scmp.ne.s32.totalorder %s160, %s161
      %p170 = scmp.eq.s32.totalorder %s26, 0
      %p171 = por %p169, %p170
      %p172 = scmp.ne.s32.totalorder %s160, %s161
      %p173 = scmp.eq.s32.totalorder %s27, 1
      %p174 = por %p172, %p173
      %p176 = scmp.ne.s32.totalorder %s161, %s175
      %p177 = scmp.eq.s32.totalorder %s27, 0
      %p178 = por %p176, %p177
      %s180 = sadd.s32 %s179, 1
      %p183 = scmp.eq.s32.totalorder %s21, 1
      %p184 = scmp.ne.s32.totalorder %s179, %s181
      %p185 = scmp.eq.s32.totalorder %s21, 0
      %p186 = por %p184, %p185
      %p187 = scmp.ne.s32.totalorder %s179, %s181
      %p188 = scmp.eq.s32.totalorder %s26, 1
      %p189 = por %p187, %p188
      %p190 = scmp.ne.s32.totalorder %s181, %s182
      %p191 = scmp.eq.s32.totalorder %s26, 0
      %p192 = por %p190, %p191
      %p193 = scmp.ne.s32.totalorder %s181, %s182
      %p194 = scmp.eq.s32.totalorder %s27, 1
      %p195 = por %p193, %p194
      %p197 = scmp.ne.s32.totalorder %s182, %s196
      %p198 = scmp.eq.s32.totalorder %s27, 0
      %p199 = por %p197, %p198
      %s201 = sadd.s32 %s200, 1
      %p204 = scmp.eq.s32.totalorder %s21, 1
      %p205 = scmp.ne.s32.totalorder %s200, %s202
      %p206 = scmp.eq.s32.totalorder %s21, 0
      %p207 = por %p205, %p206
      %p208 = scmp.ne.s32.totalorder %s200, %s202
      %p209 = scmp.eq.s32.totalorder %s26, 1
      %p210 = por %p208, %p209
      %p211 = scmp.ne.s32.totalorder %s202, %s203
      %p212 = scmp.eq.s32.totalorder %s26, 0
      %p213 = por %p211, %p212
      %p214 = scmp.ne.s32.totalorder %s202, %s203
      %p215 = scmp.eq.s32.totalorder %s27, 1
      %p216 = por %p214, %p215
      %p218 = scmp.ne.s32.totalorder %s203, %s217
      %p219 = scmp.eq.s32.totalorder %s27, 0
      %p220 = por %p218, %p219
      %s222 = sadd.s32 %s221, 1
      %p225 = scmp.eq.s32.totalorder %s21, 1
      %p226 = scmp.ne.s32.totalorder %s221, %s223
      %p227 = scmp.eq.s32.totalorder %s21, 0
      %p228 = por %p226, %p227
      %p229 = scmp.ne.s32.totalorder %s221, %s223
      %p230 = scmp.eq.s32.totalorder %s26, 1
      %p231 = por %p229, %p230
      %p232 = scmp.ne.s32.totalorder %s223, %s224
      %p233 = scmp.eq.s32.totalorder %s26, 0
      %p234 = por %p232, %p233
      %p235 = scmp.ne.s32.totalorder %s223, %s224
      %p236 = scmp.eq.s32.totalorder %s27, 1
      %p237 = por %p235, %p236
      %p239 = scmp.ne.s32.totalorder %s224, %s238
      %p240 = scmp.eq.s32.totalorder %s27, 0
      %p241 = por %p239, %p240
      %s242 = ssub.s32 %s28, %s40
      %s243 = ssub.s32 %s29, %s36
      %s244 = sor.u32 %s242, %s243
      %p245 = scmp.eq.s32.totalorder %s244, 0
      %s247 = sadd.s32 %s246, 1
      %s248 = scalar_select %p245, %s246, %s247
      %p251 = pneg %p245
      %p252 = scmp.eq.s32.totalorder %s21, 1
      %p253 = por %p251, %p252
      %p254 = scmp.ne.s32.totalorder %s246, %s249
      %p255 = scmp.eq.s32.totalorder %s21, 0
      %p256 = por %p254, %p255
      %p257 = scmp.ne.s32.totalorder %s246, %s249
      %p258 = scmp.eq.s32.totalorder %s26, 1
      %p259 = por %p257, %p258
      %p260 = scmp.ne.s32.totalorder %s249, %s250
      %p261 = scmp.eq.s32.totalorder %s26, 0
      %p262 = por %p260, %p261
      %p263 = scmp.ne.s32.totalorder %s249, %s250
      %p264 = scmp.eq.s32.totalorder %s27, 1
      %p265 = por %p263, %p264
      %p267 = scmp.ne.s32.totalorder %s250, %s266
      %p268 = scmp.eq.s32.totalorder %s27, 0
      %p269 = por %p267, %p268
      %p270 = scmp.le.s32.totalorder 1, %s21
      %p271 = scmp.lt.s32.totalorder %s21, 3
      %p272 = pnand %p270, %p271
      %p273 = pneg %p272
      // Predicated region
      $region9: #{tpu_custom_call.1} parent=5 // pred_check
        _
      $region10: #{tpu_custom_call.1} parent=5 // pred_check_branch
        %275 = sbr.rel (%p272) target = $region12
      $region11: #{tpu_custom_call.1} parent=5 // pred_region
        %s276 = ssub.s32 %s21, 1
        // Predicated region
        $region13: #{tpu_custom_call.1} parent=11 // pred_check
          %p277 = pneg %p108
        $region14: #{tpu_custom_call.1} parent=11 // pred_check_branch
          %279 = sbr.rel (%p277) target = $region16
        $region15: #{tpu_custom_call.1} parent=11 // pred_region
          _
        $region16: #{tpu_custom_call.1} parent=11 // pred_fallthru
          _
        // Predicated region
        $region17: #{tpu_custom_call.1} parent=11 // pred_check
          %p280 = pneg %p129
        $region18: #{tpu_custom_call.1} parent=11 // pred_check_branch
          %282 = sbr.rel (%p280) target = $region20
        $region19: #{tpu_custom_call.1} parent=11 // pred_region
          _
        $region20: #{tpu_custom_call.1} parent=11 // pred_fallthru
          _
        // Predicated region
        $region21: #{tpu_custom_call.1} parent=11 // pred_check
          %p283 = pneg %p150
        $region22: #{tpu_custom_call.1} parent=11 // pred_check_branch
          %285 = sbr.rel (%p283) target = $region24
        $region23: #{tpu_custom_call.1} parent=11 // pred_region
          _
        $region24: #{tpu_custom_call.1} parent=11 // pred_fallthru
          _
        // Predicated region
        $region25: #{tpu_custom_call.1} parent=11 // pred_check
          %p286 = pneg %p171
        $region26: #{tpu_custom_call.1} parent=11 // pred_check_branch
          %288 = sbr.rel (%p286) target = $region28
        $region27: #{tpu_custom_call.1} parent=11 // pred_region
          _
        $region28: #{tpu_custom_call.1} parent=11 // pred_fallthru
          _
        // Predicated region
        $region29: #{tpu_custom_call.1} parent=11 // pred_check
          %p289 = pneg %p192
        $region30: #{tpu_custom_call.1} parent=11 // pred_check_branch
          %291 = sbr.rel (%p289) target = $region32
        $region31: #{tpu_custom_call.1} parent=11 // pred_region
          _
        $region32: #{tpu_custom_call.1} parent=11 // pred_fallthru
          _
        // Predicated region
        $region33: #{tpu_custom_call.1} parent=11 // pred_check
          %p292 = pneg %p213
        $region34: #{tpu_custom_call.1} parent=11 // pred_check_branch
          %294 = sbr.rel (%p292) target = $region36
        $region35: #{tpu_custom_call.1} parent=11 // pred_region
          _
        $region36: #{tpu_custom_call.1} parent=11 // pred_fallthru
          _
        // Predicated region
        $region37: #{tpu_custom_call.1} parent=11 // pred_check
          %p295 = pneg %p234
        $region38: #{tpu_custom_call.1} parent=11 // pred_check_branch
          %297 = sbr.rel (%p295) target = $region40
        $region39: #{tpu_custom_call.1} parent=11 // pred_region
          _
        $region40: #{tpu_custom_call.1} parent=11 // pred_fallthru
          _
      $region12: #{tpu_custom_call.1} parent=5 // pred_fallthru
        _
      %p298 = scmp.lt.s32.totalorder %s21, 2
      // Predicated region
      $region41: #{tpu_custom_call.1} parent=5 // pred_check
        %p299 = pneg %p298
      $region42: #{tpu_custom_call.1} parent=5 // pred_check_branch
        %301 = sbr.rel (%p299) target = $region44
      $region43: #{tpu_custom_call.1} parent=5 // pred_region
        // Predicated region
        $region45: #{tpu_custom_call.1} parent=43 // pred_check
          %p302 = pneg %p55
        $region46: #{tpu_custom_call.1} parent=43 // pred_check_branch
          %304 = sbr.rel (%p302) target = $region48
        $region47: #{tpu_custom_call.1} parent=43 // pred_region
          %p305 = scmp.lt.s32.totalorder %s28, 1
          %s306 = scalar_select %p305, %s28, 1
          %p307 = scmp.lt.s32.totalorder %s29, 0
          %s308 = scalar_select %p307, %s29, 0
          %s309 = sadd.s32 %s308, %s306
          %s310 = smul.addr %s309, 8
          %s311 = scalar_lea.vmem %s0, %s310
        $region48: #{tpu_custom_call.1} parent=43 // pred_fallthru
          _
        // Predicated region
        $region49: #{tpu_custom_call.1} parent=43 // pred_check
          %p312 = pneg %p81
        $region50: #{tpu_custom_call.1} parent=43 // pred_check_branch
          %314 = sbr.rel (%p312) target = $region52
        $region51: #{tpu_custom_call.1} parent=43 // pred_region
          %s315 = sand.u32 %s71, 1
          %s316 = scalar_lea.sflag [#allocation5], %s315
          %s317 = sand.u32 %s71, 1
          %s318 = smul.addr %s317, 4
          %s319 = scalar_lea.vmem [#allocation4], %s318
          %s321 = ssub.s32 64, 64
          %322 = vsyncadd %s316, %s321
          %s323 = smul.addr %s28, 64
          %s324 = scalar_lea.hbm %s1, %s323
          %s326 = sshll.u32 %s319, 4
          %s327 = int_to_ptr.vmem [resolvable:$true] %s326
          %329 = dma.hbm_to_vmem [thread:$0]  %s324, 64, %s327, %s316
        $region52: #{tpu_custom_call.1} parent=43 // pred_fallthru
          _
      $region44: #{tpu_custom_call.1} parent=5 // pred_fallthru
        _
      %p330 = scmp.le.s32.totalorder 1, %s21
      %p331 = scmp.lt.s32.totalorder %s21, 3
      %p332 = pnand %p330, %p331
      %p333 = pneg %p332
      // Predicated region
      $region53: #{tpu_custom_call.1} parent=5 // pred_check
        _
      $region54: #{tpu_custom_call.1} parent=5 // pred_check_branch
        %335 = sbr.rel (%p332) target = $region56
      $region55: #{tpu_custom_call.1} parent=5 // pred_region
        %s336 = ssub.s32 %s21, 1
        %s337 = sand.u32 %s74, 1
        %s338 = scalar_lea.sflag [#allocation5], %s337
        %s339 = sand.u32 %s74, 1
        %s340 = smul.addr %s339, 4
        %s341 = scalar_lea.vmem [#allocation4], %s340
        // Predicated region
        $region57: #{tpu_custom_call.1} parent=55 // pred_check
          %p342 = pneg %p87
        $region58: #{tpu_custom_call.1} parent=55 // pred_check_branch
          %344 = sbr.rel (%p342) target = $region60
        $region59: #{tpu_custom_call.1} parent=55 // pred_region
          %345 = dma.done %s338, 64
        $region60: #{tpu_custom_call.1} parent=55 // pred_fallthru
          _
        %p346 = scmp.lt.s32.totalorder %s30, 1
        %s347 = scalar_select %p346, %s30, 1
        %p348 = scmp.lt.s32.totalorder %s31, 0
        %s349 = scalar_select %p348, %s31, 0
        %s350 = sadd.s32 %s349, %s347
        %s351 = smul.addr %s350, 8
        %s352 = scalar_lea.vmem %s0, %s351
        %p353 = pneg %p61
        %p354 = pneg %p58
        %s355 = sand.u32 %s74, 1
        %s356 = scalar_lea.sflag [#allocation5], %s355
        %s357 = sand.u32 %s74, 1
        %s358 = smul.addr %s357, 4
        %s359 = scalar_lea.vmem [#allocation4], %s358
        %p360 = pneg %p87
        %p361 = pneg %p84
        %p362 = pneg %p108
        %p363 = pneg %p105
        %p364 = pneg %p129
        %p365 = pneg %p126
        %p366 = pneg %p150
        %p367 = pneg %p147
        %p368 = pneg %p171
        %p369 = pneg %p168
        %p370 = pneg %p192
        %p371 = pneg %p189
        %p372 = pneg %p213
        %p373 = pneg %p210
        %p374 = pneg %p234
        %p375 = pneg %p231
        %p376 = pneg %p262
        %p377 = pneg %p259
        %s378 = sand.u32 %s249, 1
        %s379 = scalar_lea.sflag [#allocation6], %s378
        %s380 = sand.u32 %s249, 1
        %s381 = smul.addr %s380, 8
        %s382 = scalar_lea.vmem [#allocation7], %s381
        %p383 = scmp.lt.s32.totalorder %s30, 1
        %s384 = scalar_select %p383, %s30, 1
        %p385 = scmp.lt.s32.totalorder %s31, 0
        %s386 = scalar_select %p385, %s31, 0
        %s387 = sadd.s32 %s386, %s384
        %s388 = smul.addr %s387, 8
        %s389 = scalar_lea.vmem %s0, %s388
        %v391 = vld [vmem:[%s2] sm:$0xf]
        %v392 = vld [vmem:[%s2 + $0x4] sm:$0xf]
        %v393 = vld [vmem:[%s2 + $0x8] sm:$0xf]
        %v394 = vld [vmem:[%s2 + $0xc] sm:$0xf]
        %p395 = scmp.eq.s32.totalorder %s31, 0
        // Predicated region
        $region61: #{tpu_custom_call.1} parent=55 // pred_check
          %p396 = pneg %p395
        $region62: #{tpu_custom_call.1} parent=55 // pred_check_branch
          %398 = sbr.rel (%p396) target = $region64
        $region63: #{tpu_custom_call.1} parent=55 // pred_region
          %v399 = vld [vmem:[%s341] sm:$0xf]
          %v404 = vunpack.c.l.b16 %v391
          %v405 = vunpack.c.l.b16 %v392
          %v406 = vunpack.c.l.b16 %v393
          %v407 = vunpack.c.l.b16 %v394
          %v408 = vpack.c.b16 %v405, %v404
          %v409 = vpack.c.b16 %v407, %v406
          %410 = vrot.lane.b32.xlu0 %v408, 96
          %v411 = vpop.permute.xlu0 %410
          %412 = vrot.lane.b32.xlu0 %v409, 96
          %v413 = vpop.permute.xlu0 %412
          %vm416 = vcmask 261120
          %v418 = vsel %vm416, %v399, 0
          %420 = vmatprep.subr.bf16.mxu0 0
          %421 = vmatpush1.bf16.msra.mxu0 %v411
          %422 = vmatprep.subr.bf16.mxu0 0
          %423 = vmatpush1.bf16.msra.mxu0 %v413
          %424 = vmatprep.subr.bf16.mxu0 0
          %425 = vmatpush1.bf16.msra.mxu0 0
          %426 = vmatprep.subr.bf16.mxu0 0
          %427 = vmatpush1.bf16.msra.mxu0 0
          %428 = vmatprep.subr.bf16.mxu0 0
          %429 = vmatpush1.bf16.msra.mxu0 0
          %430 = vmatprep.subr.bf16.mxu0 0
          %431 = vmatpush1.bf16.msra.mxu0 0
          %432 = vmatprep.subr.bf16.mxu0 0
          %433 = vmatpush1.bf16.msra.mxu0 0
          %434 = vmatprep.subr.bf16.mxu0 0
          %435 = vmatpush1.bf16.msra.mxu0 0
          %436 = vmatprep.subr.bf16.mxu0 0
          %437 = vmatpush1.bf16.msra.mxu0 0
          %438 = vmatprep.subr.bf16.mxu0 0
          %439 = vmatpush1.bf16.msra.mxu0 0
          %440 = vmatprep.subr.bf16.mxu0 0
          %441 = vmatpush1.bf16.msra.mxu0 0
          %442 = vmatprep.subr.bf16.mxu0 0
          %443 = vmatpush1.bf16.msra.mxu0 0
          %444 = vmatprep.subr.bf16.mxu0 0
          %445 = vmatpush1.bf16.msra.mxu0 0
          %446 = vmatprep.subr.bf16.mxu0 0
          %447 = vmatpush1.bf16.msra.mxu0 0
          %448 = vmatprep.subr.bf16.mxu0 0
          %449 = vmatpush1.bf16.msra.mxu0 0
          %450 = vmatprep.subr.bf16.mxu0 0
          %451 = vmatpush1.bf16.msra.mxu0 0
          %452 = vmatprep.mubr.bf16.mxu0 0
          %453 = vmatmul.mubr.bf16.gmra.mrb[0].mxu0 %v418
          %v454 = vpop.f32.mrb[0].mxu0
          %v455 = vadd.f32 0.0, %v454
          %v456 = vpop.f32.mrb[0].mxu0
          %v457 = vpop.f32.mrb[0].mxu0
          %v458 = vpop.f32.mrb[0].mxu0
          %459 = vdwg.mxu0
          %v460 = vpack.c.bf16 %v455, %v455
          %vm461 = vcmask 519168
          %462 = vst.msk [vmem:[#allocation2] sm:$0xf] %vm461, %v460
        $region64: #{tpu_custom_call.1} parent=55 // pred_fallthru
          _
        %v463 = vld [vmem:[%s389] sm:$0xff]
        %v464 = vpack.c.bf16 %v463, %v463
        %v469 = vunpack.c.l.b16 %v391
        %v470 = vunpack.c.l.b16 %v392
        %v471 = vunpack.c.l.b16 %v393
        %v472 = vunpack.c.l.b16 %v394
        %v473 = vpack.c.b16 %v470, %v469
        %v474 = vpack.c.b16 %v472, %v471
        %vm477 = vcmask 261120
        %v479 = vsel %vm477, %v464, 0
        %481 = vmatprep.subr.bf16.mxu0 0
        %482 = vmatpush1.bf16.msra.mxu0 %v473
        %483 = vmatprep.subr.bf16.mxu0 0
        %484 = vmatpush1.bf16.msra.mxu0 %v474
        %485 = vmatprep.subr.bf16.mxu0 0
        %486 = vmatpush1.bf16.msra.mxu0 0
        %487 = vmatprep.subr.bf16.mxu0 0
        %488 = vmatpush1.bf16.msra.mxu0 0
        %489 = vmatprep.subr.bf16.mxu0 0
        %490 = vmatpush1.bf16.msra.mxu0 0
        %491 = vmatprep.subr.bf16.mxu0 0
        %492 = vmatpush1.bf16.msra.mxu0 0
        %493 = vmatprep.subr.bf16.mxu0 0
        %494 = vmatpush1.bf16.msra.mxu0 0
        %495 = vmatprep.subr.bf16.mxu0 0
        %496 = vmatpush1.bf16.msra.mxu0 0
        %497 = vmatprep.subr.bf16.mxu0 0
        %498 = vmatpush1.bf16.msra.mxu0 0
        %499 = vmatprep.subr.bf16.mxu0 0
        %500 = vmatpush1.bf16.msra.mxu0 0
        %501 = vmatprep.subr.bf16.mxu0 0
        %502 = vmatpush1.bf16.msra.mxu0 0
        %503 = vmatprep.subr.bf16.mxu0 0
        %504 = vmatpush1.bf16.msra.mxu0 0
        %505 = vmatprep.subr.bf16.mxu0 0
        %506 = vmatpush1.bf16.msra.mxu0 0
        %507 = vmatprep.subr.bf16.mxu0 0
        %508 = vmatpush1.bf16.msra.mxu0 0
        %509 = vmatprep.subr.bf16.mxu0 0
        %510 = vmatpush1.bf16.msra.mxu0 0
        %511 = vmatprep.subr.bf16.mxu0 0
        %512 = vmatpush1.bf16.msra.mxu0 0
        %513 = vmatprep.mubr.bf16.mxu0 0
        %514 = vmatmul.mubr.bf16.gmra.mrb[0].mxu0 %v479
        %v515 = vpop.f32.mrb[0].mxu0
        %v516 = vadd.f32 0.0, %v515
        %v517 = vpop.f32.mrb[0].mxu0
        %v518 = vpop.f32.mrb[0].mxu0
        %v519 = vpop.f32.mrb[0].mxu0
        %520 = vdwg.mxu0
        %v521 = vmul.f32 %v516, 0.5
        %v522 = vpack.c.bf16 %v521, %v521
        %v523 = vld [vmem:[#allocation2] sm:$0xf]
        %vm524 = vcmask 31744
        %v526 = vsel %vm524, %v522, 0
        %v529 = vsel %vm524, %v523, 0
        %531 = vmatprep.subr.bf16.mxu0 0
        %532 = vmatpush1.bf16.xpose.msra.mxu0 %v529
        %533 = vmatprep.subr.bf16.mxu0 0
        %534 = vmatpush1.bf16.xpose.msra.mxu0 0
        %535 = vmatprep.subr.bf16.mxu0 0
        %536 = vmatpush1.bf16.xpose.msra.mxu0 0
        %537 = vmatprep.subr.bf16.mxu0 0
        %538 = vmatpush1.bf16.xpose.msra.mxu0 0
        %539 = vmatprep.subr.bf16.mxu0 0
        %540 = vmatpush1.bf16.xpose.msra.mxu0 0
        %541 = vmatprep.subr.bf16.mxu0 0
        %542 = vmatpush1.bf16.xpose.msra.mxu0 0
        %543 = vmatprep.subr.bf16.mxu0 0
        %544 = vmatpush1.bf16.xpose.msra.mxu0 0
        %545 = vmatprep.subr.bf16.mxu0 0
        %546 = vmatpush1.bf16.xpose.msra.mxu0 0
        %547 = vmatprep.subr.bf16.mxu0 0
        %548 = vmatpush1.bf16.xpose.msra.mxu0 0
        %549 = vmatprep.subr.bf16.mxu0 0
        %550 = vmatpush1.bf16.xpose.msra.mxu0 0
        %551 = vmatprep.subr.bf16.mxu0 0
        %552 = vmatpush1.bf16.xpose.msra.mxu0 0
        %553 = vmatprep.subr.bf16.mxu0 0
        %554 = vmatpush1.bf16.xpose.msra.mxu0 0
        %555 = vmatprep.subr.bf16.mxu0 0
        %556 = vmatpush1.bf16.xpose.msra.mxu0 0
        %557 = vmatprep.subr.bf16.mxu0 0
        %558 = vmatpush1.bf16.xpose.msra.mxu0 0
        %559 = vmatprep.subr.bf16.mxu0 0
        %560 = vmatpush1.bf16.xpose.msra.mxu0 0
        %561 = vmatprep.subr.bf16.mxu0 0
        %562 = vmatpush1.bf16.xpose.msra.mxu0 0
        %563 = vmatprep.mubr.bf16.mxu0 0
        %564 = vmatmul.mubr.bf16.gmra.mrb[0].mxu0 %v526
        %v565 = vpop.f32.mrb[0].mxu0
        %v566 = vadd.f32 0.0, %v565
        %v567 = vpop.f32.mrb[0].mxu0
        %v568 = vpop.f32.mrb[0].mxu0
        %v569 = vpop.f32.mrb[0].mxu0
        %570 = vdwg.mxu0
        %vm571 = vcmask 64512
        %v572 = vsel %vm571, %v566, -inf
        %573 = vmax.xlane.f32.xlu0 %v572
        %v574 = vpop.xlane.xlu0 %573
        %v575 = vsub.f32 %v566, %v574
        %v576 = vmul.f32 %v575, 1.442695
        %v577 = vpow.pop %v576
        %v578 = vsel %vm571, %v577, 0.0
        %579 = vadd.xlane.f32.xlu0 %v578
        %v580 = vpop.xlane.xlu0 %579
        %v581 = vrcp.pop %v580
        %v582 = vmul.f32 %v577, %v581
        %v583 = vpack.c.bf16 %v582, %v582
        %v585 = vunpack.c.l.b16 %v523
        %v586 = vpack.c.b16 %v585, %v585
        %587 = vrot.lane.b32.xlu0 %v586, 96
        %v588 = vpop.permute.xlu0 %587
        %v590 = vsel %vm571, %v583, 0
        %vm592 = vcmask 1043456
        %v594 = vsel %vm592, %v588, 0
        %596 = vmatprep.subr.bf16.mxu0 0
        %597 = vmatpush1.bf16.msra.mxu0 %v594
        %598 = vmatprep.subr.bf16.mxu0 0
        %599 = vmatpush1.bf16.msra.mxu0 0
        %600 = vmatprep.subr.bf16.mxu0 0
        %601 = vmatpush1.bf16.msra.mxu0 0
        %602 = vmatprep.subr.bf16.mxu0 0
        %603 = vmatpush1.bf16.msra.mxu0 0
        %604 = vmatprep.subr.bf16.mxu0 0
        %605 = vmatpush1.bf16.msra.mxu0 0
        %606 = vmatprep.subr.bf16.mxu0 0
        %607 = vmatpush1.bf16.msra.mxu0 0
        %608 = vmatprep.subr.bf16.mxu0 0
        %609 = vmatpush1.bf16.msra.mxu0 0
        %610 = vmatprep.subr.bf16.mxu0 0
        %611 = vmatpush1.bf16.msra.mxu0 0
        %612 = vmatprep.subr.bf16.mxu0 0
        %613 = vmatpush1.bf16.msra.mxu0 0
        %614 = vmatprep.subr.bf16.mxu0 0
        %615 = vmatpush1.bf16.msra.mxu0 0
        %616 = vmatprep.subr.bf16.mxu0 0
        %617 = vmatpush1.bf16.msra.mxu0 0
        %618 = vmatprep.subr.bf16.mxu0 0
        %619 = vmatpush1.bf16.msra.mxu0 0
        %620 = vmatprep.subr.bf16.mxu0 0
        %621 = vmatpush1.bf16.msra.mxu0 0
        %622 = vmatprep.subr.bf16.mxu0 0
        %623 = vmatpush1.bf16.msra.mxu0 0
        %624 = vmatprep.subr.bf16.mxu0 0
        %625 = vmatpush1.bf16.msra.mxu0 0
        %626 = vmatprep.subr.bf16.mxu0 0
        %627 = vmatpush1.bf16.msra.mxu0 0
        %628 = vmatprep.mubr.bf16.mxu0 0
        %629 = vmatmul.mubr.bf16.gmra.mrb[0].mxu0 %v590
        %v630 = vpop.f32.mrb[0].mxu0
        %v631 = vadd.f32 0.0, %v630
        %v632 = vpop.f32.mrb[0].mxu0
        %v633 = vpop.f32.mrb[0].mxu0
        %v634 = vpop.f32.mrb[0].mxu0
        %635 = vdwg.mxu0
        %636 = vst.msk [vmem:[#allocation3] sm:$0xff] %vm524, %v631
        %638 = vrot.lane.b32.xlu0 %v522, 124
        %v639 = vpop.permute.xlu0 %638
        %640 = vrot.lane.b32.xlu0 %v586, 124
        %v641 = vpop.permute.xlu0 %640
        %v643 = vsel %vm524, %v639, 0
        %v646 = vsel %vm524, %v641, 0
        %648 = vmatprep.subr.bf16.mxu0 0
        %649 = vmatpush1.bf16.xpose.msra.mxu0 %v646
        %650 = vmatprep.subr.bf16.mxu0 0
        %651 = vmatpush1.bf16.xpose.msra.mxu0 0
        %652 = vmatprep.subr.bf16.mxu0 0
        %653 = vmatpush1.bf16.xpose.msra.mxu0 0
        %654 = vmatprep.subr.bf16.mxu0 0
        %655 = vmatpush1.bf16.xpose.msra.mxu0 0
        %656 = vmatprep.subr.bf16.mxu0 0
        %657 = vmatpush1.bf16.xpose.msra.mxu0 0
        %658 = vmatprep.subr.bf16.mxu0 0
        %659 = vmatpush1.bf16.xpose.msra.mxu0 0
        %660 = vmatprep.subr.bf16.mxu0 0
        %661 = vmatpush1.bf16.xpose.msra.mxu0 0
        %662 = vmatprep.subr.bf16.mxu0 0
        %663 = vmatpush1.bf16.xpose.msra.mxu0 0
        %664 = vmatprep.subr.bf16.mxu0 0
        %665 = vmatpush1.bf16.xpose.msra.mxu0 0
        %666 = vmatprep.subr.bf16.mxu0 0
        %667 = vmatpush1.bf16.xpose.msra.mxu0 0
        %668 = vmatprep.subr.bf16.mxu0 0
        %669 = vmatpush1.bf16.xpose.msra.mxu0 0
        %670 = vmatprep.subr.bf16.mxu0 0
        %671 = vmatpush1.bf16.xpose.msra.mxu0 0
        %672 = vmatprep.subr.bf16.mxu0 0
        %673 = vmatpush1.bf16.xpose.msra.mxu0 0
        %674 = vmatprep.subr.bf16.mxu0 0
        %675 = vmatpush1.bf16.xpose.msra.mxu0 0
        %676 = vmatprep.subr.bf16.mxu0 0
        %677 = vmatpush1.bf16.xpose.msra.mxu0 0
        %678 = vmatprep.subr.bf16.mxu0 0
        %679 = vmatpush1.bf16.xpose.msra.mxu0 0
        %680 = vmatprep.mubr.bf16.mxu0 0
        %681 = vmatmul.mubr.bf16.gmra.mrb[0].mxu0 %v643
        %v682 = vpop.f32.mrb[0].mxu0
        %v683 = vadd.f32 0.0, %v682
        %v684 = vpop.f32.mrb[0].mxu0
        %v685 = vpop.f32.mrb[0].mxu0
        %v686 = vpop.f32.mrb[0].mxu0
        %687 = vdwg.mxu0
        %v688 = vsel %vm571, %v683, -inf
        %689 = vmax.xlane.f32.xlu0 %v688
        %v690 = vpop.xlane.xlu0 %689
        %v691 = vsub.f32 %v683, %v690
        %v692 = vmul.f32 %v691, 1.442695
        %v693 = vpow.pop %v692
        %v694 = vsel %vm571, %v693, 0.0
        %695 = vadd.xlane.f32.xlu0 %v694
        %v696 = vpop.xlane.xlu0 %695
        %v697 = vrcp.pop %v696
        %v698 = vmul.f32 %v693, %v697
        %v699 = vpack.c.bf16 %v698, %v698
        %700 = vrot.lane.b32.xlu0 %v586, 92
        %v701 = vpop.permute.xlu0 %700
        %v703 = vsel %vm571, %v699, 0
        %v706 = vsel %vm592, %v701, 0
        %708 = vmatprep.subr.bf16.mxu0 0
        %709 = vmatpush1.bf16.msra.mxu0 %v706
        %710 = vmatprep.subr.bf16.mxu0 0
        %711 = vmatpush1.bf16.msra.mxu0 0
        %712 = vmatprep.subr.bf16.mxu0 0
        %713 = vmatpush1.bf16.msra.mxu0 0
        %714 = vmatprep.subr.bf16.mxu0 0
        %715 = vmatpush1.bf16.msra.mxu0 0
        %716 = vmatprep.subr.bf16.mxu0 0
        %717 = vmatpush1.bf16.msra.mxu0 0
        %718 = vmatprep.subr.bf16.mxu0 0
        %719 = vmatpush1.bf16.msra.mxu0 0
        %720 = vmatprep.subr.bf16.mxu0 0
        %721 = vmatpush1.bf16.msra.mxu0 0
        %722 = vmatprep.subr.bf16.mxu0 0
        %723 = vmatpush1.bf16.msra.mxu0 0
        %724 = vmatprep.subr.bf16.mxu0 0
        %725 = vmatpush1.bf16.msra.mxu0 0
        %726 = vmatprep.subr.bf16.mxu0 0
        %727 = vmatpush1.bf16.msra.mxu0 0
        %728 = vmatprep.subr.bf16.mxu0 0
        %729 = vmatpush1.bf16.msra.mxu0 0
        %730 = vmatprep.subr.bf16.mxu0 0
        %731 = vmatpush1.bf16.msra.mxu0 0
        %732 = vmatprep.subr.bf16.mxu0 0
        %733 = vmatpush1.bf16.msra.mxu0 0
        %734 = vmatprep.subr.bf16.mxu0 0
        %735 = vmatpush1.bf16.msra.mxu0 0
        %736 = vmatprep.subr.bf16.mxu0 0
        %737 = vmatpush1.bf16.msra.mxu0 0
        %738 = vmatprep.subr.bf16.mxu0 0
        %739 = vmatpush1.bf16.msra.mxu0 0
        %740 = vmatprep.mubr.bf16.mxu0 0
        %741 = vmatmul.mubr.bf16.gmra.mrb[0].mxu0 %v703
        %v742 = vpop.f32.mrb[0].mxu0
        %v743 = vadd.f32 0.0, %v742
        %v744 = vpop.f32.mrb[0].mxu0
        %v745 = vpop.f32.mrb[0].mxu0
        %v746 = vpop.f32.mrb[0].mxu0
        %747 = vdwg.mxu0
        %749 = vrot.lane.b32.xlu0 %v743, 4
        %v750 = vpop.permute.xlu0 %749
        %vm752 = vcmask 64544
        %753 = vst.msk [vmem:[#allocation3] sm:$0xff] %vm752, %v750
        %754 = vrot.lane.b32.xlu0 %v522, 120
        %v755 = vpop.permute.xlu0 %754
        %756 = vrot.lane.b32.xlu0 %v586, 120
        %v757 = vpop.permute.xlu0 %756
        %v759 = vsel %vm524, %v755, 0
        %v762 = vsel %vm524, %v757, 0
        %764 = vmatprep.subr.bf16.mxu0 0
        %765 = vmatpush1.bf16.xpose.msra.mxu0 %v762
        %766 = vmatprep.subr.bf16.mxu0 0
        %767 = vmatpush1.bf16.xpose.msra.mxu0 0
        %768 = vmatprep.subr.bf16.mxu0 0
        %769 = vmatpush1.bf16.xpose.msra.mxu0 0
        %770 = vmatprep.subr.bf16.mxu0 0
        %771 = vmatpush1.bf16.xpose.msra.mxu0 0
        %772 = vmatprep.subr.bf16.mxu0 0
        %773 = vmatpush1.bf16.xpose.msra.mxu0 0
        %774 = vmatprep.subr.bf16.mxu0 0
        %775 = vmatpush1.bf16.xpose.msra.mxu0 0
        %776 = vmatprep.subr.bf16.mxu0 0
        %777 = vmatpush1.bf16.xpose.msra.mxu0 0
        %778 = vmatprep.subr.bf16.mxu0 0
        %779 = vmatpush1.bf16.xpose.msra.mxu0 0
        %780 = vmatprep.subr.bf16.mxu0 0
        %781 = vmatpush1.bf16.xpose.msra.mxu0 0
        %782 = vmatprep.subr.bf16.mxu0 0
        %783 = vmatpush1.bf16.xpose.msra.mxu0 0
        %784 = vmatprep.subr.bf16.mxu0 0
        %785 = vmatpush1.bf16.xpose.msra.mxu0 0
        %786 = vmatprep.subr.bf16.mxu0 0
        %787 = vmatpush1.bf16.xpose.msra.mxu0 0
        %788 = vmatprep.subr.bf16.mxu0 0
        %789 = vmatpush1.bf16.xpose.msra.mxu0 0
        %790 = vmatprep.subr.bf16.mxu0 0
        %791 = vmatpush1.bf16.xpose.msra.mxu0 0
        %792 = vmatprep.subr.bf16.mxu0 0
        %793 = vmatpush1.bf16.xpose.msra.mxu0 0
        %794 = vmatprep.subr.bf16.mxu0 0
        %795 = vmatpush1.bf16.xpose.msra.mxu0 0
        %796 = vmatprep.mubr.bf16.mxu0 0
        %797 = vmatmul.mubr.bf16.gmra.mrb[0].mxu0 %v759
        %v798 = vpop.f32.mrb[0].mxu0
        %v799 = vadd.f32 0.0, %v798
        %v800 = vpop.f32.mrb[0].mxu0
        %v801 = vpop.f32.mrb[0].mxu0
        %v802 = vpop.f32.mrb[0].mxu0
        %803 = vdwg.mxu0
        %v804 = vsel %vm571, %v799, -inf
        %805 = vmax.xlane.f32.xlu0 %v804
        %v806 = vpop.xlane.xlu0 %805
        %v807 = vsub.f32 %v799, %v806
        %v808 = vmul.f32 %v807, 1.442695
        %v809 = vpow.pop %v808
        %v810 = vsel %vm571, %v809, 0.0
        %811 = vadd.xlane.f32.xlu0 %v810
        %v812 = vpop.xlane.xlu0 %811
        %v813 = vrcp.pop %v812
        %v814 = vmul.f32 %v809, %v813
        %v815 = vpack.c.bf16 %v814, %v814
        %816 = vrot.lane.b32.xlu0 %v586, 88
        %v817 = vpop.permute.xlu0 %816
        %v819 = vsel %vm571, %v815, 0
        %v822 = vsel %vm592, %v817, 0
        %824 = vmatprep.subr.bf16.mxu0 0
        %825 = vmatpush1.bf16.msra.mxu0 %v822
        %826 = vmatprep.subr.bf16.mxu0 0
        %827 = vmatpush1.bf16.msra.mxu0 0
        %828 = vmatprep.subr.bf16.mxu0 0
        %829 = vmatpush1.bf16.msra.mxu0 0
        %830 = vmatprep.subr.bf16.mxu0 0
        %831 = vmatpush1.bf16.msra.mxu0 0
        %832 = vmatprep.subr.bf16.mxu0 0
        %833 = vmatpush1.bf16.msra.mxu0 0
        %834 = vmatprep.subr.bf16.mxu0 0
        %835 = vmatpush1.bf16.msra.mxu0 0
        %836 = vmatprep.subr.bf16.mxu0 0
        %837 = vmatpush1.bf16.msra.mxu0 0
        %838 = vmatprep.subr.bf16.mxu0 0
        %839 = vmatpush1.bf16.msra.mxu0 0
        %840 = vmatprep.subr.bf16.mxu0 0
        %841 = vmatpush1.bf16.msra.mxu0 0
        %842 = vmatprep.subr.bf16.mxu0 0
        %843 = vmatpush1.bf16.msra.mxu0 0
        %844 = vmatprep.subr.bf16.mxu0 0
        %845 = vmatpush1.bf16.msra.mxu0 0
        %846 = vmatprep.subr.bf16.mxu0 0
        %847 = vmatpush1.bf16.msra.mxu0 0
        %848 = vmatprep.subr.bf16.mxu0 0
        %849 = vmatpush1.bf16.msra.mxu0 0
        %850 = vmatprep.subr.bf16.mxu0 0
        %851 = vmatpush1.bf16.msra.mxu0 0
        %852 = vmatprep.subr.bf16.mxu0 0
        %853 = vmatpush1.bf16.msra.mxu0 0
        %854 = vmatprep.subr.bf16.mxu0 0
        %855 = vmatpush1.bf16.msra.mxu0 0
        %856 = vmatprep.mubr.bf16.mxu0 0
        %857 = vmatmul.mubr.bf16.gmra.mrb[0].mxu0 %v819
        %v858 = vpop.f32.mrb[0].mxu0
        %v859 = vadd.f32 0.0, %v858
        %v860 = vpop.f32.mrb[0].mxu0
        %v861 = vpop.f32.mrb[0].mxu0
        %v862 = vpop.f32.mrb[0].mxu0
        %863 = vdwg.mxu0
        %865 = vrot.lane.b32.xlu0 %v859, 8
        %v866 = vpop.permute.xlu0 %865
        %vm868 = vcmask 97344
        %869 = vst.msk [vmem:[#allocation3] sm:$0xff] %vm868, %v866
        %870 = vrot.lane.b32.xlu0 %v522, 116
        %v871 = vpop.permute.xlu0 %870
        %872 = vrot.lane.b32.xlu0 %v586, 116
        %v873 = vpop.permute.xlu0 %872
        %v875 = vsel %vm524, %v871, 0
        %v878 = vsel %vm524, %v873, 0
        %880 = vmatprep.subr.bf16.mxu0 0
        %881 = vmatpush1.bf16.xpose.msra.mxu0 %v878
        %882 = vmatprep.subr.bf16.mxu0 0
        %883 = vmatpush1.bf16.xpose.msra.mxu0 0
        %884 = vmatprep.subr.bf16.mxu0 0
        %885 = vmatpush1.bf16.xpose.msra.mxu0 0
        %886 = vmatprep.subr.bf16.mxu0 0
        %887 = vmatpush1.bf16.xpose.msra.mxu0 0
        %888 = vmatprep.subr.bf16.mxu0 0
        %889 = vmatpush1.bf16.xpose.msra.mxu0 0
        %890 = vmatprep.subr.bf16.mxu0 0
        %891 = vmatpush1.bf16.xpose.msra.mxu0 0
        %892 = vmatprep.subr.bf16.mxu0 0
        %893 = vmatpush1.bf16.xpose.msra.mxu0 0
        %894 = vmatprep.subr.bf16.mxu0 0
        %895 = vmatpush1.bf16.xpose.msra.mxu0 0
        %896 = vmatprep.subr.bf16.mxu0 0
        %897 = vmatpush1.bf16.xpose.msra.mxu0 0
        %898 = vmatprep.subr.bf16.mxu0 0
        %899 = vmatpush1.bf16.xpose.msra.mxu0 0
        %900 = vmatprep.subr.bf16.mxu0 0
        %901 = vmatpush1.bf16.xpose.msra.mxu0 0
        %902 = vmatprep.subr.bf16.mxu0 0
        %903 = vmatpush1.bf16.xpose.msra.mxu0 0
        %904 = vmatprep.subr.bf16.mxu0 0
        %905 = vmatpush1.bf16.xpose.msra.mxu0 0
        %906 = vmatprep.subr.bf16.mxu0 0
        %907 = vmatpush1.bf16.xpose.msra.mxu0 0
        %908 = vmatprep.subr.bf16.mxu0 0
        %909 = vmatpush1.bf16.xpose.msra.mxu0 0
        %910 = vmatprep.subr.bf16.mxu0 0
        %911 = vmatpush1.bf16.xpose.msra.mxu0 0
        %912 = vmatprep.mubr.bf16.mxu0 0
        %913 = vmatmul.mubr.bf16.gmra.mrb[0].mxu0 %v875
        %v914 = vpop.f32.mrb[0].mxu0
        %v915 = vadd.f32 0.0, %v914
        %v916 = vpop.f32.mrb[0].mxu0
        %v917 = vpop.f32.mrb[0].mxu0
        %v918 = vpop.f32.mrb[0].mxu0
        %919 = vdwg.mxu0
        %v920 = vsel %vm571, %v915, -inf
        %921 = vmax.xlane.f32.xlu0 %v920
        %v922 = vpop.xlane.xlu0 %921
        %v923 = vsub.f32 %v915, %v922
        %v924 = vmul.f32 %v923, 1.442695
        %v925 = vpow.pop %v924
        %v926 = vsel %vm571, %v925, 0.0
        %927 = vadd.xlane.f32.xlu0 %v926
        %v928 = vpop.xlane.xlu0 %927
        %v929 = vrcp.pop %v928
        %v930 = vmul.f32 %v925, %v929
        %v931 = vpack.c.bf16 %v930, %v930
        %932 = vrot.lane.b32.xlu0 %v586, 84
        %v933 = vpop.permute.xlu0 %932
        %v935 = vsel %vm571, %v931, 0
        %v938 = vsel %vm592, %v933, 0
        %940 = vmatprep.subr.bf16.mxu0 0
        %941 = vmatpush1.bf16.msra.mxu0 %v938
        %942 = vmatprep.subr.bf16.mxu0 0
        %943 = vmatpush1.bf16.msra.mxu0 0
        %944 = vmatprep.subr.bf16.mxu0 0
        %945 = vmatpush1.bf16.msra.mxu0 0
        %946 = vmatprep.subr.bf16.mxu0 0
        %947 = vmatpush1.bf16.msra.mxu0 0
        %948 = vmatprep.subr.bf16.mxu0 0
        %949 = vmatpush1.bf16.msra.mxu0 0
        %950 = vmatprep.subr.bf16.mxu0 0
        %951 = vmatpush1.bf16.msra.mxu0 0
        %952 = vmatprep.subr.bf16.mxu0 0
        %953 = vmatpush1.bf16.msra.mxu0 0
        %954 = vmatprep.subr.bf16.mxu0 0
        %955 = vmatpush1.bf16.msra.mxu0 0
        %956 = vmatprep.subr.bf16.mxu0 0
        %957 = vmatpush1.bf16.msra.mxu0 0
        %958 = vmatprep.subr.bf16.mxu0 0
        %959 = vmatpush1.bf16.msra.mxu0 0
        %960 = vmatprep.subr.bf16.mxu0 0
        %961 = vmatpush1.bf16.msra.mxu0 0
        %962 = vmatprep.subr.bf16.mxu0 0
        %963 = vmatpush1.bf16.msra.mxu0 0
        %964 = vmatprep.subr.bf16.mxu0 0
        %965 = vmatpush1.bf16.msra.mxu0 0
        %966 = vmatprep.subr.bf16.mxu0 0
        %967 = vmatpush1.bf16.msra.mxu0 0
        %968 = vmatprep.subr.bf16.mxu0 0
        %969 = vmatpush1.bf16.msra.mxu0 0
        %970 = vmatprep.subr.bf16.mxu0 0
        %971 = vmatpush1.bf16.msra.mxu0 0
        %972 = vmatprep.mubr.bf16.mxu0 0
        %973 = vmatmul.mubr.bf16.gmra.mrb[0].mxu0 %v935
        %v974 = vpop.f32.mrb[0].mxu0
        %v975 = vadd.f32 0.0, %v974
        %v976 = vpop.f32.mrb[0].mxu0
        %v977 = vpop.f32.mrb[0].mxu0
        %v978 = vpop.f32.mrb[0].mxu0
        %979 = vdwg.mxu0
        %981 = vrot.lane.b32.xlu0 %v975, 12
        %v982 = vpop.permute.xlu0 %981
        %vm984 = vcmask 130144
        %985 = vst.msk [vmem:[#allocation3] sm:$0xff] %vm984, %v982
        %986 = vrot.lane.b32.xlu0 %v522, 112
        %v987 = vpop.permute.xlu0 %986
        %988 = vrot.lane.b32.xlu0 %v586, 112
        %v989 = vpop.permute.xlu0 %988
        %v991 = vsel %vm524, %v987, 0
        %v994 = vsel %vm524, %v989, 0
        %996 = vmatprep.subr.bf16.mxu0 0
        %997 = vmatpush1.bf16.xpose.msra.mxu0 %v994
        %998 = vmatprep.subr.bf16.mxu0 0
        %999 = vmatpush1.bf16.xpose.msra.mxu0 0
        %1000 = vmatprep.subr.bf16.mxu0 0
        %1001 = vmatpush1.bf16.xpose.msra.mxu0 0
        %1002 = vmatprep.subr.bf16.mxu0 0
        %1003 = vmatpush1.bf16.xpose.msra.mxu0 0
        %1004 = vmatprep.subr.bf16.mxu0 0
        %1005 = vmatpush1.bf16.xpose.msra.mxu0 0
        %1006 = vmatprep.subr.bf16.mxu0 0
        %1007 = vmatpush1.bf16.xpose.msra.mxu0 0
        %1008 = vmatprep.subr.bf16.mxu0 0
        %1009 = vmatpush1.bf16.xpose.msra.mxu0 0
        %1010 = vmatprep.subr.bf16.mxu0 0
        %1011 = vmatpush1.bf16.xpose.msra.mxu0 0
        %1012 = vmatprep.subr.bf16.mxu0 0
        %1013 = vmatpush1.bf16.xpose.msra.mxu0 0
        %1014 = vmatprep.subr.bf16.mxu0 0
        %1015 = vmatpush1.bf16.xpose.msra.mxu0 0
        %1016 = vmatprep.subr.bf16.mxu0 0
        %1017 = vmatpush1.bf16.xpose.msra.mxu0 0
        %1018 = vmatprep.subr.bf16.mxu0 0
        %1019 = vmatpush1.bf16.xpose.msra.mxu0 0
        %1020 = vmatprep.subr.bf16.mxu0 0
        %1021 = vmatpush1.bf16.xpose.msra.mxu0 0
        %1022 = vmatprep.subr.bf16.mxu0 0
        %1023 = vmatpush1.bf16.xpose.msra.mxu0 0
        %1024 = vmatprep.subr.bf16.mxu0 0
        %1025 = vmatpush1.bf16.xpose.msra.mxu0 0
        %1026 = vmatprep.subr.bf16.mxu0 0
        %1027 = vmatpush1.bf16.xpose.msra.mxu0 0
        %1028 = vmatprep.mubr.bf16.mxu0 0
        %1029 = vmatmul.mubr.bf16.gmra.mrb[0].mxu0 %v991
        %v1030 = vpop.f32.mrb[0].mxu0
        %v1031 = vadd.f32 0.0, %v1030
        %v1032 = vpop.f32.mrb[0].mxu0
        %v1033 = vpop.f32.mrb[0].mxu0
        %v1034 = vpop.f32.mrb[0].mxu0
        %1035 = vdwg.mxu0
        %v1036 = vsel %vm571, %v1031, -inf
        %1037 = vmax.xlane.f32.xlu0 %v1036
        %v1038 = vpop.xlane.xlu0 %1037
        %v1039 = vsub.f32 %v1031, %v1038
        %v1040 = vmul.f32 %v1039, 1.442695
        %v1041 = vpow.pop %v1040
        %v1042 = vsel %vm571, %v1041, 0.0
        %1043 = vadd.xlane.f32.xlu0 %v1042
        %v1044 = vpop.xlane.xlu0 %1043
        %v1045 = vrcp.pop %v1044
        %v1046 = vmul.f32 %v1041, %v1045
        %v1047 = vpack.c.bf16 %v1046, %v1046
        %1048 = vrot.lane.b32.xlu0 %v586, 80
        %v1049 = vpop.permute.xlu0 %1048
        %v1051 = vsel %vm571, %v1047, 0
        %v1054 = vsel %vm592, %v1049, 0
        %1056 = vmatprep.subr.bf16.mxu0 0
        %1057 = vmatpush1.bf16.msra.mxu0 %v1054
        %1058 = vmatprep.subr.bf16.mxu0 0
        %1059 = vmatpush1.bf16.msra.mxu0 0
        %1060 = vmatprep.subr.bf16.mxu0 0
        %1061 = vmatpush1.bf16.msra.mxu0 0
        %1062 = vmatprep.subr.bf16.mxu0 0
        %1063 = vmatpush1.bf16.msra.mxu0 0
        %1064 = vmatprep.subr.bf16.mxu0 0
        %1065 = vmatpush1.bf16.msra.mxu0 0
        %1066 = vmatprep.subr.bf16.mxu0 0
        %1067 = vmatpush1.bf16.msra.mxu0 0
        %1068 = vmatprep.subr.bf16.mxu0 0
        %1069 = vmatpush1.bf16.msra.mxu0 0
        %1070 = vmatprep.subr.bf16.mxu0 0
        %1071 = vmatpush1.bf16.msra.mxu0 0
        %1072 = vmatprep.subr.bf16.mxu0 0
        %1073 = vmatpush1.bf16.msra.mxu0 0
        %1074 = vmatprep.subr.bf16.mxu0 0
        %1075 = vmatpush1.bf16.msra.mxu0 0
        %1076 = vmatprep.subr.bf16.mxu0 0
        %1077 = vmatpush1.bf16.msra.mxu0 0
        %1078 = vmatprep.subr.bf16.mxu0 0
        %1079 = vmatpush1.bf16.msra.mxu0 0
        %1080 = vmatprep.subr.bf16.mxu0 0
        %1081 = vmatpush1.bf16.msra.mxu0 0
        %1082 = vmatprep.subr.bf16.mxu0 0
        %1083 = vmatpush1.bf16.msra.mxu0 0
        %1084 = vmatprep.subr.bf16.mxu0 0
        %1085 = vmatpush1.bf16.msra.mxu0 0
        %1086 = vmatprep.subr.bf16.mxu0 0
        %1087 = vmatpush1.bf16.msra.mxu0 0
        %1088 = vmatprep.mubr.bf16.mxu0 0
        %1089 = vmatmul.mubr.bf16.gmra.mrb[0].mxu0 %v1051
        %v1090 = vpop.f32.mrb[0].mxu0
        %v1091 = vadd.f32 0.0, %v1090
        %v1092 = vpop.f32.mrb[0].mxu0
        %v1093 = vpop.f32.mrb[0].mxu0
        %v1094 = vpop.f32.mrb[0].mxu0
        %1095 = vdwg.mxu0
        %1097 = vrot.lane.b32.xlu0 %v1091, 16
        %v1098 = vpop.permute.xlu0 %1097
        %vm1100 = vcmask 162944
        %1101 = vst.msk [vmem:[#allocation3] sm:$0xff] %vm1100, %v1098
        %1102 = vrot.lane.b32.xlu0 %v522, 108
        %v1103 = vpop.permute.xlu0 %1102
        %1104 = vrot.lane.b32.xlu0 %v586, 108
        %v1105 = vpop.permute.xlu0 %1104
        %v1107 = vsel %vm524, %v1103, 0
        %v1110 = vsel %vm524, %v1105, 0
        %1112 = vmatprep.subr.bf16.mxu0 0
        %1113 = vmatpush1.bf16.xpose.msra.mxu0 %v1110
        %1114 = vmatprep.subr.bf16.mxu0 0
        %1115 = vmatpush1.bf16.xpose.msra.mxu0 0
        %1116 = vmatprep.subr.bf16.mxu0 0
        %1117 = vmatpush1.bf16.xpose.msra.mxu0 0
        %1118 = vmatprep.subr.bf16.mxu0 0
        %1119 = vmatpush1.bf16.xpose.msra.mxu0 0
        %1120 = vmatprep.subr.bf16.mxu0 0
        %1121 = vmatpush1.bf16.xpose.msra.mxu0 0
        %1122 = vmatprep.subr.bf16.mxu0 0
        %1123 = vmatpush1.bf16.xpose.msra.mxu0 0
        %1124 = vmatprep.subr.bf16.mxu0 0
        %1125 = vmatpush1.bf16.xpose.msra.mxu0 0
        %1126 = vmatprep.subr.bf16.mxu0 0
        %1127 = vmatpush1.bf16.xpose.msra.mxu0 0
        %1128 = vmatprep.subr.bf16.mxu0 0
        %1129 = vmatpush1.bf16.xpose.msra.mxu0 0
        %1130 = vmatprep.subr.bf16.mxu0 0
        %1131 = vmatpush1.bf16.xpose.msra.mxu0 0
        %1132 = vmatprep.subr.bf16.mxu0 0
        %1133 = vmatpush1.bf16.xpose.msra.mxu0 0
        %1134 = vmatprep.subr.bf16.mxu0 0
        %1135 = vmatpush1.bf16.xpose.msra.mxu0 0
        %1136 = vmatprep.subr.bf16.mxu0 0
        %1137 = vmatpush1.bf16.xpose.msra.mxu0 0
        %1138 = vmatprep.subr.bf16.mxu0 0
        %1139 = vmatpush1.bf16.xpose.msra.mxu0 0
        %1140 = vmatprep.subr.bf16.mxu0 0
        %1141 = vmatpush1.bf16.xpose.msra.mxu0 0
        %1142 = vmatprep.subr.bf16.mxu0 0
        %1143 = vmatpush1.bf16.xpose.msra.mxu0 0
        %1144 = vmatprep.mubr.bf16.mxu0 0
        %1145 = vmatmul.mubr.bf16.gmra.mrb[0].mxu0 %v1107
        %v1146 = vpop.f32.mrb[0].mxu0
        %v1147 = vadd.f32 0.0, %v1146
        %v1148 = vpop.f32.mrb[0].mxu0
        %v1149 = vpop.f32.mrb[0].mxu0
        %v1150 = vpop.f32.mrb[0].mxu0
        %1151 = vdwg.mxu0
        %v1152 = vsel %vm571, %v1147, -inf
        %1153 = vmax.xlane.f32.xlu0 %v1152
        %v1154 = vpop.xlane.xlu0 %1153
        %v1155 = vsub.f32 %v1147, %v1154
        %v1156 = vmul.f32 %v1155, 1.442695
        %v1157 = vpow.pop %v1156
        %v1158 = vsel %vm571, %v1157, 0.0
        %1159 = vadd.xlane.f32.xlu0 %v1158
        %v1160 = vpop.xlane.xlu0 %1159
        %v1161 = vrcp.pop %v1160
        %v1162 = vmul.f32 %v1157, %v1161
        %v1163 = vpack.c.bf16 %v1162, %v1162
        %1164 = vrot.lane.b32.xlu0 %v586, 76
        %v1165 = vpop.permute.xlu0 %1164
        %v1167 = vsel %vm571, %v1163, 0
        %v1170 = vsel %vm592, %v1165, 0
        %1172 = vmatprep.subr.bf16.mxu0 0
        %1173 = vmatpush1.bf16.msra.mxu0 %v1170
        %1174 = vmatprep.subr.bf16.mxu0 0
        %1175 = vmatpush1.bf16.msra.mxu0 0
        %1176 = vmatprep.subr.bf16.mxu0 0
        %1177 = vmatpush1.bf16.msra.mxu0 0
        %1178 = vmatprep.subr.bf16.mxu0 0
        %1179 = vmatpush1.bf16.msra.mxu0 0
        %1180 = vmatprep.subr.bf16.mxu0 0
        %1181 = vmatpush1.bf16.msra.mxu0 0
        %1182 = vmatprep.subr.bf16.mxu0 0
        %1183 = vmatpush1.bf16.msra.mxu0 0
        %1184 = vmatprep.subr.bf16.mxu0 0
        %1185 = vmatpush1.bf16.msra.mxu0 0
        %1186 = vmatprep.subr.bf16.mxu0 0
        %1187 = vmatpush1.bf16.msra.mxu0 0
        %1188 = vmatprep.subr.bf16.mxu0 0
        %1189 = vmatpush1.bf16.msra.mxu0 0
        %1190 = vmatprep.subr.bf16.mxu0 0
        %1191 = vmatpush1.bf16.msra.mxu0 0
        %1192 = vmatprep.subr.bf16.mxu0 0
        %1193 = vmatpush1.bf16.msra.mxu0 0
        %1194 = vmatprep.subr.bf16.mxu0 0
        %1195 = vmatpush1.bf16.msra.mxu0 0
        %1196 = vmatprep.subr.bf16.mxu0 0
        %1197 = vmatpush1.bf16.msra.mxu0 0
        %1198 = vmatprep.subr.bf16.mxu0 0
        %1199 = vmatpush1.bf16.msra.mxu0 0
        %1200 = vmatprep.subr.bf16.mxu0 0
        %1201 = vmatpush1.bf16.msra.mxu0 0
        %1202 = vmatprep.subr.bf16.mxu0 0
        %1203 = vmatpush1.bf16.msra.mxu0 0
        %1204 = vmatprep.mubr.bf16.mxu0 0
        %1205 = vmatmul.mubr.bf16.gmra.mrb[0].mxu0 %v1167
        %v1206 = vpop.f32.mrb[0].mxu0
        %v1207 = vadd.f32 0.0, %v1206
        %v1208 = vpop.f32.mrb[0].mxu0
        %v1209 = vpop.f32.mrb[0].mxu0
        %v1210 = vpop.f32.mrb[0].mxu0
        %1211 = vdwg.mxu0
        %1213 = vrot.lane.b32.xlu0 %v1207, 20
        %v1214 = vpop.permute.xlu0 %1213
        %vm1216 = vcmask 195744
        %1217 = vst.msk [vmem:[#allocation3] sm:$0xff] %vm1216, %v1214
        %1218 = vrot.lane.b32.xlu0 %v522, 104
        %v1219 = vpop.permute.xlu0 %1218
        %1220 = vrot.lane.b32.xlu0 %v586, 104
        %v1221 = vpop.permute.xlu0 %1220
        %v1223 = vsel %vm524, %v1219, 0
        %v1226 = vsel %vm524, %v1221, 0
        %1228 = vmatprep.subr.bf16.mxu0 0
        %1229 = vmatpush1.bf16.xpose.msra.mxu0 %v1226
        %1230 = vmatprep.subr.bf16.mxu0 0
        %1231 = vmatpush1.bf16.xpose.msra.mxu0 0
        %1232 = vmatprep.subr.bf16.mxu0 0
        %1233 = vmatpush1.bf16.xpose.msra.mxu0 0
        %1234 = vmatprep.subr.bf16.mxu0 0
        %1235 = vmatpush1.bf16.xpose.msra.mxu0 0
        %1236 = vmatprep.subr.bf16.mxu0 0
        %1237 = vmatpush1.bf16.xpose.msra.mxu0 0
        %1238 = vmatprep.subr.bf16.mxu0 0
        %1239 = vmatpush1.bf16.xpose.msra.mxu0 0
        %1240 = vmatprep.subr.bf16.mxu0 0
        %1241 = vmatpush1.bf16.xpose.msra.mxu0 0
        %1242 = vmatprep.subr.bf16.mxu0 0
        %1243 = vmatpush1.bf16.xpose.msra.mxu0 0
        %1244 = vmatprep.subr.bf16.mxu0 0
        %1245 = vmatpush1.bf16.xpose.msra.mxu0 0
        %1246 = vmatprep.subr.bf16.mxu0 0
        %1247 = vmatpush1.bf16.xpose.msra.mxu0 0
        %1248 = vmatprep.subr.bf16.mxu0 0
        %1249 = vmatpush1.bf16.xpose.msra.mxu0 0
        %1250 = vmatprep.subr.bf16.mxu0 0
        %1251 = vmatpush1.bf16.xpose.msra.mxu0 0
        %1252 = vmatprep.subr.bf16.mxu0 0
        %1253 = vmatpush1.bf16.xpose.msra.mxu0 0
        %1254 = vmatprep.subr.bf16.mxu0 0
        %1255 = vmatpush1.bf16.xpose.msra.mxu0 0
        %1256 = vmatprep.subr.bf16.mxu0 0
        %1257 = vmatpush1.bf16.xpose.msra.mxu0 0
        %1258 = vmatprep.subr.bf16.mxu0 0
        %1259 = vmatpush1.bf16.xpose.msra.mxu0 0
        %1260 = vmatprep.mubr.bf16.mxu0 0
        %1261 = vmatmul.mubr.bf16.gmra.mrb[0].mxu0 %v1223
        %v1262 = vpop.f32.mrb[0].mxu0
        %v1263 = vadd.f32 0.0, %v1262
        %v1264 = vpop.f32.mrb[0].mxu0
        %v1265 = vpop.f32.mrb[0].mxu0
        %v1266 = vpop.f32.mrb[0].mxu0
        %1267 = vdwg.mxu0
        %v1268 = vsel %vm571, %v1263, -inf
        %1269 = vmax.xlane.f32.xlu0 %v1268
        %v1270 = vpop.xlane.xlu0 %1269
        %v1271 = vsub.f32 %v1263, %v1270
        %v1272 = vmul.f32 %v1271, 1.442695
        %v1273 = vpow.pop %v1272
        %v1274 = vsel %vm571, %v1273, 0.0
        %1275 = vadd.xlane.f32.xlu0 %v1274
        %v1276 = vpop.xlane.xlu0 %1275
        %v1277 = vrcp.pop %v1276
        %v1278 = vmul.f32 %v1273, %v1277
        %v1279 = vpack.c.bf16 %v1278, %v1278
        %1280 = vrot.lane.b32.xlu0 %v586, 72
        %v1281 = vpop.permute.xlu0 %1280
        %v1283 = vsel %vm571, %v1279, 0
        %v1286 = vsel %vm592, %v1281, 0
        %1288 = vmatprep.subr.bf16.mxu0 0
        %1289 = vmatpush1.bf16.msra.mxu0 %v1286
        %1290 = vmatprep.subr.bf16.mxu0 0
        %1291 = vmatpush1.bf16.msra.mxu0 0
        %1292 = vmatprep.subr.bf16.mxu0 0
        %1293 = vmatpush1.bf16.msra.mxu0 0
        %1294 = vmatprep.subr.bf16.mxu0 0
        %1295 = vmatpush1.bf16.msra.mxu0 0
        %1296 = vmatprep.subr.bf16.mxu0 0
        %1297 = vmatpush1.bf16.msra.mxu0 0
        %1298 = vmatprep.subr.bf16.mxu0 0
        %1299 = vmatpush1.bf16.msra.mxu0 0
        %1300 = vmatprep.subr.bf16.mxu0 0
        %1301 = vmatpush1.bf16.msra.mxu0 0
        %1302 = vmatprep.subr.bf16.mxu0 0
        %1303 = vmatpush1.bf16.msra.mxu0 0
        %1304 = vmatprep.subr.bf16.mxu0 0
        %1305 = vmatpush1.bf16.msra.mxu0 0
        %1306 = vmatprep.subr.bf16.mxu0 0
        %1307 = vmatpush1.bf16.msra.mxu0 0
        %1308 = vmatprep.subr.bf16.mxu0 0
        %1309 = vmatpush1.bf16.msra.mxu0 0
        %1310 = vmatprep.subr.bf16.mxu0 0
        %1311 = vmatpush1.bf16.msra.mxu0 0
        %1312 = vmatprep.subr.bf16.mxu0 0
        %1313 = vmatpush1.bf16.msra.mxu0 0
        %1314 = vmatprep.subr.bf16.mxu0 0
        %1315 = vmatpush1.bf16.msra.mxu0 0
        %1316 = vmatprep.subr.bf16.mxu0 0
        %1317 = vmatpush1.bf16.msra.mxu0 0
        %1318 = vmatprep.subr.bf16.mxu0 0
        %1319 = vmatpush1.bf16.msra.mxu0 0
        %1320 = vmatprep.mubr.bf16.mxu0 0
        %1321 = vmatmul.mubr.bf16.gmra.mrb[0].mxu0 %v1283
        %v1322 = vpop.f32.mrb[0].mxu0
        %v1323 = vadd.f32 0.0, %v1322
        %v1324 = vpop.f32.mrb[0].mxu0
        %v1325 = vpop.f32.mrb[0].mxu0
        %v1326 = vpop.f32.mrb[0].mxu0
        %1327 = vdwg.mxu0
        %1329 = vrot.lane.b32.xlu0 %v1323, 24
        %v1330 = vpop.permute.xlu0 %1329
        %vm1332 = vcmask 228544
        %1333 = vst.msk [vmem:[#allocation3] sm:$0xff] %vm1332, %v1330
        %1334 = vrot.lane.b32.xlu0 %v522, 100
        %v1335 = vpop.permute.xlu0 %1334
        %1336 = vrot.lane.b32.xlu0 %v586, 100
        %v1337 = vpop.permute.xlu0 %1336
        %v1339 = vsel %vm524, %v1335, 0
        %v1342 = vsel %vm524, %v1337, 0
        %1344 = vmatprep.subr.bf16.mxu0 0
        %1345 = vmatpush1.bf16.xpose.msra.mxu0 %v1342
        %1346 = vmatprep.subr.bf16.mxu0 0
        %1347 = vmatpush1.bf16.xpose.msra.mxu0 0
        %1348 = vmatprep.subr.bf16.mxu0 0
        %1349 = vmatpush1.bf16.xpose.msra.mxu0 0
        %1350 = vmatprep.subr.bf16.mxu0 0
        %1351 = vmatpush1.bf16.xpose.msra.mxu0 0
        %1352 = vmatprep.subr.bf16.mxu0 0
        %1353 = vmatpush1.bf16.xpose.msra.mxu0 0
        %1354 = vmatprep.subr.bf16.mxu0 0
        %1355 = vmatpush1.bf16.xpose.msra.mxu0 0
        %1356 = vmatprep.subr.bf16.mxu0 0
        %1357 = vmatpush1.bf16.xpose.msra.mxu0 0
        %1358 = vmatprep.subr.bf16.mxu0 0
        %1359 = vmatpush1.bf16.xpose.msra.mxu0 0
        %1360 = vmatprep.subr.bf16.mxu0 0
        %1361 = vmatpush1.bf16.xpose.msra.mxu0 0
        %1362 = vmatprep.subr.bf16.mxu0 0
        %1363 = vmatpush1.bf16.xpose.msra.mxu0 0
        %1364 = vmatprep.subr.bf16.mxu0 0
        %1365 = vmatpush1.bf16.xpose.msra.mxu0 0
        %1366 = vmatprep.subr.bf16.mxu0 0
        %1367 = vmatpush1.bf16.xpose.msra.mxu0 0
        %1368 = vmatprep.subr.bf16.mxu0 0
        %1369 = vmatpush1.bf16.xpose.msra.mxu0 0
        %1370 = vmatprep.subr.bf16.mxu0 0
        %1371 = vmatpush1.bf16.xpose.msra.mxu0 0
        %1372 = vmatprep.subr.bf16.mxu0 0
        %1373 = vmatpush1.bf16.xpose.msra.mxu0 0
        %1374 = vmatprep.subr.bf16.mxu0 0
        %1375 = vmatpush1.bf16.xpose.msra.mxu0 0
        %1376 = vmatprep.mubr.bf16.mxu0 0
        %1377 = vmatmul.mubr.bf16.gmra.mrb[0].mxu0 %v1339
        %v1378 = vpop.f32.mrb[0].mxu0
        %v1379 = vadd.f32 0.0, %v1378
        %v1380 = vpop.f32.mrb[0].mxu0
        %v1381 = vpop.f32.mrb[0].mxu0
        %v1382 = vpop.f32.mrb[0].mxu0
        %1383 = vdwg.mxu0
        %v1384 = vsel %vm571, %v1379, -inf
        %1385 = vmax.xlane.f32.xlu0 %v1384
        %v1386 = vpop.xlane.xlu0 %1385
        %v1387 = vsub.f32 %v1379, %v1386
        %v1388 = vmul.f32 %v1387, 1.442695
        %v1389 = vpow.pop %v1388
        %v1390 = vsel %vm571, %v1389, 0.0
        %1391 = vadd.xlane.f32.xlu0 %v1390
        %v1392 = vpop.xlane.xlu0 %1391
        %v1393 = vrcp.pop %v1392
        %v1394 = vmul.f32 %v1389, %v1393
        %v1395 = vpack.c.bf16 %v1394, %v1394
        %1396 = vrot.lane.b32.xlu0 %v586, 68
        %v1397 = vpop.permute.xlu0 %1396
        %v1399 = vsel %vm571, %v1395, 0
        %v1402 = vsel %vm592, %v1397, 0
        %1404 = vmatprep.subr.bf16.mxu0 0
        %1405 = vmatpush1.bf16.msra.mxu0 %v1402
        %1406 = vmatprep.subr.bf16.mxu0 0
        %1407 = vmatpush1.bf16.msra.mxu0 0
        %1408 = vmatprep.subr.bf16.mxu0 0
        %1409 = vmatpush1.bf16.msra.mxu0 0
        %1410 = vmatprep.subr.bf16.mxu0 0
        %1411 = vmatpush1.bf16.msra.mxu0 0
        %1412 = vmatprep.subr.bf16.mxu0 0
        %1413 = vmatpush1.bf16.msra.mxu0 0
        %1414 = vmatprep.subr.bf16.mxu0 0
        %1415 = vmatpush1.bf16.msra.mxu0 0
        %1416 = vmatprep.subr.bf16.mxu0 0
        %1417 = vmatpush1.bf16.msra.mxu0 0
        %1418 = vmatprep.subr.bf16.mxu0 0
        %1419 = vmatpush1.bf16.msra.mxu0 0
        %1420 = vmatprep.subr.bf16.mxu0 0
        %1421 = vmatpush1.bf16.msra.mxu0 0
        %1422 = vmatprep.subr.bf16.mxu0 0
        %1423 = vmatpush1.bf16.msra.mxu0 0
        %1424 = vmatprep.subr.bf16.mxu0 0
        %1425 = vmatpush1.bf16.msra.mxu0 0
        %1426 = vmatprep.subr.bf16.mxu0 0
        %1427 = vmatpush1.bf16.msra.mxu0 0
        %1428 = vmatprep.subr.bf16.mxu0 0
        %1429 = vmatpush1.bf16.msra.mxu0 0
        %1430 = vmatprep.subr.bf16.mxu0 0
        %1431 = vmatpush1.bf16.msra.mxu0 0
        %1432 = vmatprep.subr.bf16.mxu0 0
        %1433 = vmatpush1.bf16.msra.mxu0 0
        %1434 = vmatprep.subr.bf16.mxu0 0
        %1435 = vmatpush1.bf16.msra.mxu0 0
        %1436 = vmatprep.mubr.bf16.mxu0 0
        %1437 = vmatmul.mubr.bf16.gmra.mrb[0].mxu0 %v1399
        %v1438 = vpop.f32.mrb[0].mxu0
        %v1439 = vadd.f32 0.0, %v1438
        %v1440 = vpop.f32.mrb[0].mxu0
        %v1441 = vpop.f32.mrb[0].mxu0
        %v1442 = vpop.f32.mrb[0].mxu0
        %1443 = vdwg.mxu0
        %1445 = vrot.lane.b32.xlu0 %v1439, 28
        %v1446 = vpop.permute.xlu0 %1445
        %vm1448 = vcmask 261344
        %1449 = vst.msk [vmem:[#allocation3] sm:$0xff] %vm1448, %v1446
        %v1450 = vld [vmem:[#allocation3] sm:$0xff]
        %v1451 = vadd.f32 %v1450, %v463
        %v1452 = vsel %vm477, %v1451, 0.0
        %1453 = vadd.xlane.f32.xlu0 %v1452
        %v1454 = vpop.xlane.xlu0 %1453
        %v1455 = vrcp.pop 32.0
        %v1456 = vmul.f32 %v1454, %v1455
        %v1457 = vsub.f32 %v1451, %v1456
        %v1458 = vmul.f32 %v1457, %v1457
        %v1459 = vsel %vm477, %v1458, 0.0
        %1460 = vadd.xlane.f32.xlu0 %v1459
        %v1461 = vpop.xlane.xlu0 %1460
        %v1462 = vmul.f32 %v1461, %v1455
        %v1463 = vadd.f32 %v1462, 1e-05
        %v1464 = vrsqrt.pop %v1463
        %v1465 = vmul.f32 %v1457, %v1464
        %v1466 = vld [vmem:[%s5] sm:$0x1]
        %v1468 = vlaneseq
        %v1469 = vshrl.u32 %v1468, 7
        %v1470 = vsub.s32 0, %v1469
        %v1471 = vrot.slane %v1466, %v1470
        %v1473 = vmul.f32 %v1465, %v1471
        %v1474 = vld [vmem:[%s6] sm:$0x1]
        %v1476 = vlaneseq
        %v1477 = vshrl.u32 %v1476, 7
        %v1478 = vsub.s32 0, %v1477
        %v1479 = vrot.slane %v1474, %v1478
        %v1481 = vadd.f32 %v1473, %v1479
        %v1482 = vpack.c.bf16 %v1481, %v1481
        %v1483 = vld [vmem:[%s3] sm:$0xf]
        %v1484 = vld [vmem:[%s3 + $0x4] sm:$0xf]
        %v1485 = vld [vmem:[%s3 + $0x8] sm:$0xf]
        %v1486 = vld [vmem:[%s3 + $0xc] sm:$0xf]
        %v1491 = vunpack.c.l.b16 %v1483
        %v1492 = vunpack.c.l.b16 %v1484
        %v1493 = vunpack.c.l.b16 %v1485
        %v1494 = vunpack.c.l.b16 %v1486
        %v1495 = vpack.c.b16 %v1492, %v1491
        %v1496 = vpack.c.b16 %v1494, %v1493
        %v1500 = vsel %vm477, %v1482, 0
        %1502 = vmatprep.subr.bf16.mxu0 0
        %1503 = vmatpush1.bf16.msra.mxu0 %v1495
        %1504 = vmatprep.subr.bf16.mxu0 0
        %1505 = vmatpush1.bf16.msra.mxu0 %v1496
        %1506 = vmatprep.subr.bf16.mxu0 0
        %1507 = vmatpush1.bf16.msra.mxu0 0
        %1508 = vmatprep.subr.bf16.mxu0 0
        %1509 = vmatpush1.bf16.msra.mxu0 0
        %1510 = vmatprep.subr.bf16.mxu0 0
        %1511 = vmatpush1.bf16.msra.mxu0 0
        %1512 = vmatprep.subr.bf16.mxu0 0
        %1513 = vmatpush1.bf16.msra.mxu0 0
        %1514 = vmatprep.subr.bf16.mxu0 0
        %1515 = vmatpush1.bf16.msra.mxu0 0
        %1516 = vmatprep.subr.bf16.mxu0 0
        %1517 = vmatpush1.bf16.msra.mxu0 0
        %1518 = vmatprep.subr.bf16.mxu0 0
        %1519 = vmatpush1.bf16.msra.mxu0 0
        %1520 = vmatprep.subr.bf16.mxu0 0
        %1521 = vmatpush1.bf16.msra.mxu0 0
        %1522 = vmatprep.subr.bf16.mxu0 0
        %1523 = vmatpush1.bf16.msra.mxu0 0
        %1524 = vmatprep.subr.bf16.mxu0 0
        %1525 = vmatpush1.bf16.msra.mxu0 0
        %1526 = vmatprep.subr.bf16.mxu0 0
        %1527 = vmatpush1.bf16.msra.mxu0 0
        %1528 = vmatprep.subr.bf16.mxu0 0
        %1529 = vmatpush1.bf16.msra.mxu0 0
        %1530 = vmatprep.subr.bf16.mxu0 0
        %1531 = vmatpush1.bf16.msra.mxu0 0
        %1532 = vmatprep.subr.bf16.mxu0 0
        %1533 = vmatpush1.bf16.msra.mxu0 0
        %1534 = vmatprep.mubr.bf16.mxu0 0
        %1535 = vmatmul.mubr.bf16.gmra.mrb[0].mxu0 %v1500
        %v1536 = vpop.f32.mrb[0].mxu0
        %v1537 = vadd.f32 0.0, %v1536
        %v1538 = vpop.f32.mrb[0].mxu0
        %v1539 = vpop.f32.mrb[0].mxu0
        %v1540 = vpop.f32.mrb[0].mxu0
        %1541 = vdwg.mxu0
        %v1542 = vmax.f32 %v1537, 0.0
        %v1543 = vpack.c.bf16 %v1542, %v1542
        %v1544 = vld [vmem:[%s4] sm:$0xf]
        %v1545 = vld [vmem:[%s4 + $0x4] sm:$0xf]
        %v1546 = vld [vmem:[%s4 + $0x8] sm:$0xf]
        %v1547 = vld [vmem:[%s4 + $0xc] sm:$0xf]
        %v1548 = vld [vmem:[%s4 + $0x10] sm:$0xf]
        %v1549 = vld [vmem:[%s4 + $0x14] sm:$0xf]
        %v1550 = vld [vmem:[%s4 + $0x18] sm:$0xf]
        %v1551 = vld [vmem:[%s4 + $0x1c] sm:$0xf]
        %v1560 = vunpack.c.l.b16 %v1544
        %v1561 = vunpack.c.l.b16 %v1545
        %v1562 = vunpack.c.l.b16 %v1546
        %v1563 = vunpack.c.l.b16 %v1547
        %v1564 = vunpack.c.l.b16 %v1548
        %v1565 = vunpack.c.l.b16 %v1549
        %v1566 = vunpack.c.l.b16 %v1550
        %v1567 = vunpack.c.l.b16 %v1551
        %v1568 = vpack.c.b16 %v1561, %v1560
        %v1569 = vpack.c.b16 %v1563, %v1562
        %v1570 = vpack.c.b16 %v1565, %v1564
        %v1571 = vpack.c.b16 %v1567, %v1566
        %vm1576 = vcmask 523264
        %v1578 = vsel %vm1576, %v1543, 0
        %1580 = vmatprep.subr.bf16.mxu0 0
        %1581 = vmatpush1.bf16.msra.mxu0 %v1568
        %1582 = vmatprep.subr.bf16.mxu0 0
        %1583 = vmatpush1.bf16.msra.mxu0 %v1569
        %1584 = vmatprep.subr.bf16.mxu0 0
        %1585 = vmatpush1.bf16.msra.mxu0 %v1570
        %1586 = vmatprep.subr.bf16.mxu0 0
        %1587 = vmatpush1.bf16.msra.mxu0 %v1571
        %1588 = vmatprep.subr.bf16.mxu0 0
        %1589 = vmatpush1.bf16.msra.mxu0 0
        %1590 = vmatprep.subr.bf16.mxu0 0
        %1591 = vmatpush1.bf16.msra.mxu0 0
        %1592 = vmatprep.subr.bf16.mxu0 0
        %1593 = vmatpush1.bf16.msra.mxu0 0
        %1594 = vmatprep.subr.bf16.mxu0 0
        %1595 = vmatpush1.bf16.msra.mxu0 0
        %1596 = vmatprep.subr.bf16.mxu0 0
        %1597 = vmatpush1.bf16.msra.mxu0 0
        %1598 = vmatprep.subr.bf16.mxu0 0
        %1599 = vmatpush1.bf16.msra.mxu0 0
        %1600 = vmatprep.subr.bf16.mxu0 0
        %1601 = vmatpush1.bf16.msra.mxu0 0
        %1602 = vmatprep.subr.bf16.mxu0 0
        %1603 = vmatpush1.bf16.msra.mxu0 0
        %1604 = vmatprep.subr.bf16.mxu0 0
        %1605 = vmatpush1.bf16.msra.mxu0 0
        %1606 = vmatprep.subr.bf16.mxu0 0
        %1607 = vmatpush1.bf16.msra.mxu0 0
        %1608 = vmatprep.subr.bf16.mxu0 0
        %1609 = vmatpush1.bf16.msra.mxu0 0
        %1610 = vmatprep.subr.bf16.mxu0 0
        %1611 = vmatpush1.bf16.msra.mxu0 0
        %1612 = vmatprep.mubr.bf16.mxu0 0
        %1613 = vmatmul.mubr.bf16.gmra.mrb[0].mxu0 %v1578
        %v1614 = vpop.f32.mrb[0].mxu0
        %v1615 = vadd.f32 %v1481, %v1614
        %v1616 = vpop.f32.mrb[0].mxu0
        %v1617 = vpop.f32.mrb[0].mxu0
        %v1618 = vpop.f32.mrb[0].mxu0
        %1619 = vdwg.mxu0
        %v1620 = vsel %vm477, %v1615, 0.0
        %1621 = vadd.xlane.f32.xlu0 %v1620
        %v1622 = vpop.xlane.xlu0 %1621
        %v1623 = vmul.f32 %v1622, %v1455
        %v1624 = vsub.f32 %v1615, %v1623
        %v1625 = vmul.f32 %v1624, %v1624
        %v1626 = vsel %vm477, %v1625, 0.0
        %1627 = vadd.xlane.f32.xlu0 %v1626
        %v1628 = vpop.xlane.xlu0 %1627
        %v1629 = vmul.f32 %v1628, %v1455
        %v1630 = vadd.f32 %v1629, 1e-05
        %v1631 = vrsqrt.pop %v1630
        %v1632 = vmul.f32 %v1624, %v1631
        %v1633 = vld [vmem:[%s7] sm:$0x1]
        %v1635 = vlaneseq
        %v1636 = vshrl.u32 %v1635, 7
        %v1637 = vsub.s32 0, %v1636
        %v1638 = vrot.slane %v1633, %v1637
        %v1640 = vmul.f32 %v1632, %v1638
        %v1641 = vld [vmem:[%s8] sm:$0x1]
        %v1643 = vlaneseq
        %v1644 = vshrl.u32 %v1643, 7
        %v1645 = vsub.s32 0, %v1644
        %v1646 = vrot.slane %v1641, %v1645
        %v1648 = vadd.f32 %v1640, %v1646
        %1649 = vst.msk [vmem:[%s382] sm:$0xff] %vm477, %v1648
        %s1650 = sand.u32 %s249, 1
        %s1651 = scalar_lea.sflag [#allocation6], %s1650
        %s1652 = sand.u32 %s249, 1
        %s1653 = smul.addr %s1652, 8
        %s1654 = scalar_lea.vmem [#allocation7], %s1653
        // Predicated region
        $region65: #{tpu_custom_call.1} parent=55 // pred_check
          %p1655 = pneg %p259
        $region66: #{tpu_custom_call.1} parent=55 // pred_check_branch
          %1657 = sbr.rel (%p1655) target = $region68
        $region67: #{tpu_custom_call.1} parent=55 // pred_region
          %s1659 = ssub.s32 128, 128
          %1660 = vsyncadd %s1651, %s1659
          %s1661 = sadd.s32 %s31, %s30
          %s1662 = smul.addr %s1661, 128
          %s1663 = scalar_lea.hbm %s9, %s1662
          %s1665 = sshll.u32 %s1654, 4
          %s1666 = int_to_ptr.vmem [resolvable:$true] %s1665
          %1668 = dma.vmem_to_hbm [thread:$0]  %s1666, 128, %s1663, %s1651
        $region68: #{tpu_custom_call.1} parent=55 // pred_fallthru
          _
      $region56: #{tpu_custom_call.1} parent=5 // pred_fallthru
        _
      %p1669 = scmp.le.s32.totalorder 2, %s21
      // Predicated region
      $region69: #{tpu_custom_call.1} parent=5 // pred_check
        %p1670 = pneg %p1669
      $region70: #{tpu_custom_call.1} parent=5 // pred_check_branch
        %1672 = sbr.rel (%p1670) target = $region72
      $region71: #{tpu_custom_call.1} parent=5 // pred_region
        %s1673 = ssub.s32 %s21, 2
        // Predicated region
        $region73: #{tpu_custom_call.1} parent=71 // pred_check
          %p1674 = pneg %p265
        $region74: #{tpu_custom_call.1} parent=71 // pred_check_branch
          %1676 = sbr.rel (%p1674) target = $region76
        $region75: #{tpu_custom_call.1} parent=71 // pred_region
          %s1677 = sand.u32 %s250, 1
          %s1678 = scalar_lea.sflag [#allocation6], %s1677
          %s1679 = sand.u32 %s250, 1
          %s1680 = smul.addr %s1679, 8
          %s1681 = scalar_lea.vmem [#allocation7], %s1680
          %1682 = dma.done %s1678, 128
        $region76: #{tpu_custom_call.1} parent=71 // pred_fallthru
          _
      $region72: #{tpu_custom_call.1} parent=5 // pred_fallthru
        _
    $region6: #{tpu_custom_call.1} parent=1 // loop_footer
      %s25 = sadd.s32 1, %s21
    $region7: #{tpu_custom_call.1} parent=1 // loop_footer_branch
      %20 = sbr.rel target = $region3
    $region8: #{tpu_custom_call.1} parent=1 // loop_exit
      _
    %1683 = vsyncpa [#allocation5], 1
    %s1684 = scalar_lea.sflag [#allocation5], 1
    %1685 = vsyncpa %s1684, 1
    %1686 = vsyncpa [#allocation6], 1
    %s1687 = scalar_lea.sflag [#allocation6], 1
    %1688 = vsyncpa %s1687, 1

</llo_original>
